<compile_context>
chip_gen: v7x
topology: tpu7x:2x2x1
jax: 0.10.0
libtpu: 0.0.40
codegen_flags: <defaults>
</compile_context>

<pallas_src>
from math import sqrt

import jax
import jax.numpy as jnp
from jax.experimental import pallas as pl
from jax.experimental.pallas import tpu as pltpu


# ----------------------------- Pallas kernel ---------------------------------

def attention_kernel(qproj_ref, pmem_ref, loc_ref, bias_ref, mem_ref,
                     wfused_ref, wscore_ref, bscore_ref,
                     ctx_ref, attw_ref):
    # per-grid-step shapes (T, A already padded to multiples of 128 by the wrapper):
    #   qproj_ref : (Bt, A)    f32      pmem_ref : (Bt, T, A)  bf16
    #   loc_ref   : (Bt, T, 2K) bf16    bias_ref : (Bt, T)     bf16  (0 or -1e30)
    #   mem_ref   : (Bt, T, E) bf16
    #   wfused_ref: (2K, A)    bf16     wscore_ref: (1, A)     f32
    #   bscore_ref: (1,)       f32 in SMEM
    Bt, T, A = pmem_ref.shape
    K2 = loc_ref.shape[2]

    # fused location conv1d + location dense: single (Bt*T, 2K) x (2K, A) MXU dot
    loc2d = loc_ref[...].reshape(Bt * T, K2)
    local_proj = jnp.dot(loc2d, wfused_ref[...],
                         preferred_element_type=jnp.float32).reshape(Bt, T, A)

    # energies (f32 elementwise); hoisted q_proj is broadcast over T
    e = jnp.tanh(qproj_ref[...][:, None, :] + local_proj
                 + pmem_ref[...].astype(jnp.float32))             # (Bt, T, A)

    # score projection: VPU multiply + lane reduction (no degenerate N=1 MXU dot)
    wrow = wscore_ref[...].reshape(1, 1, A)
    scores = jnp.sum(e * wrow, axis=-1) + bscore_ref[0]           # (Bt, T)

    # masking via additive bias (finite -1e30 keeps fully-masked / padded rows NaN-free)
    scores = scores + bias_ref[...].astype(jnp.float32)

    # softmax over T; reciprocal instead of per-lane divide (exact, keeps sum-to-1)
    m = jnp.max(scores, axis=-1, keepdims=True)
    p = jnp.exp(scores - m)
    denom = jnp.sum(p, axis=-1, keepdims=True)
    w = p * pl.reciprocal(denom, approx=False)                    # (Bt, T) f32
    attw_ref[...] = w.astype(attw_ref.dtype)

    # context: VPU weighted sum over T (bf16 products, f32 accumulation).
    # No MXU matvec, no f32 copy of `memory`.
    prod = w.astype(jnp.bfloat16)[:, :, None] * mem_ref[...]      # (Bt, T, E) bf16
    ctx = jnp.sum(prod.astype(jnp.float32), axis=1)               # (Bt, E) f32
    ctx_ref[...] = ctx.astype(ctx_ref.dtype)


# ----------------------------- chip-aware sizing ------------------------------

def _vmem_config():
    """Per-TensorCore VMEM capacity, derived vmem_limit / tiling budget, and a
    2-TC (v7x-class) flag.  Falls back to the 128 MiB / 1-TC assumption (v5e/v6e)
    if the hardware query is unavailable."""
    phys = 128 * 1024 * 1024
    try:
        info = pltpu.get_tpu_info()
        phys = int(getattr(info, "vmem_capacity_bytes", phys))
    except Exception:
        pass
    two_tc = phys <= 64 * 1024 * 1024            # v7x-class: 64 MiB per TC, 2 TCs/chip
    vmem_limit = min(int(phys * 0.75), 96 * 1024 * 1024)
    budget = int(vmem_limit * 0.7)               # headroom for misc compiler scratch
    return vmem_limit, budget, two_tc


def _per_row_vmem_bytes(T, E, A, K2):
    """Conservative per-batch-row VMEM estimate: double-buffered DMA blocks PLUS
    the in-kernel intermediates (this is what the old budgeter ignored)."""
    dma = 2 * (A * 4            # q_proj (f32)
               + T * A * 2      # processed_memory (bf16)
               + T * K2 * 2     # im2col location features (bf16)
               + T * 2          # additive mask bias (bf16)
               + T * E * 2      # memory (bf16)
               + E * 4          # ctx output (f32)
               + T * 4)         # attw output (f32)
    interm = (3 * T * A * 4     # pmem f32 upcast, local_proj, e
              + T * E * 2       # bf16 context product
              + T * E * 4       # possible f32 copy feeding the f32-accumulated sum
              + 8 * T * 4)      # scores / p / w / bias rows
    return dma + interm


def _choose_batch_block(B, per_row_bytes, budget_bytes, two_tc):
    bt = max(1, budget_bytes // max(per_row_bytes, 1))
    if two_tc:
        # v7x: aim for >= 4 grid steps (>= 2 per TensorCore) so each core's
        # BlockSpec double-buffer has something to prefetch against.
        bt = min(bt, max(1, -(-B // 4)))
    if bt >= B:
        return B                                  # single step: block == full batch dim
    # multi-step: the batch dim sits in the sublane slot of the 2-D blocks, so keep
    # it 8-aligned (the budget above is conservative, so the 8-row floor is safe).
    bt = max(8, (bt // 8) * 8)
    return B if bt >= B else bt


# ----------------------------- wrapper ---------------------------------------

def attention_forward(query, memory, processed_memory, attention_weights_cat,
                      reverse_memory_mask, params):
    """params (PyTorch layouts): wq (A,R), wconv (F,2,K), wloc (A,F), wscore (1,A), bscore (1,)."""
    wq, wconv, wloc, wscore, bscore = params
    B, _ = query.shape
    _, T, E = memory.shape
    A = processed_memory.shape[-1]
    F, _, K = wconv.shape
    if K % 2 != 1:
        raise ValueError("location kernel_size must be odd (as in Tacotron2); even K does "
                         "not produce a length-T conv output in the original module either.")
    pad = (K - 1) // 2
    K2 = 2 * K
    NEG = -1e30

    # -------- one-time XLA-side prep (layout plumbing + tiny matmuls) --------
    # query projection hoisted out of the kernel: one (B,R)x(R,A) matmul
    q_proj = jnp.dot(query, wq.T).astype(jnp.float32)                        # (B, A)
    # fused conv+dense weight: wfused[(k,c), a] = sum_f wconv[f,c,k] * wloc[a,f]
    wfused = jnp.einsum('fck,af->kca', wconv, wloc).reshape(K2, A)
    # im2col slab for the location conv, laid out (B, T, (k,c)) so the kernel does a
    # single lane-contiguous dot and never slices/transposes per conv tap
    awc_pad = jnp.pad(attention_weights_cat, ((0, 0), (0, 0), (pad, pad)))   # (B, 2, T+K-1)
    cols = jnp.stack([awc_pad[:, :, k:k + T] for k in range(K)], axis=1)     # (B, K, 2, T)
    im2col = jnp.transpose(cols, (0, 3, 1, 2)).reshape(B, T, K2)             # (B, T, 2K)
    # additive mask bias (replaces int32 mask stream; half the bytes, no compare/select)
    bias = jnp.where(reverse_memory_mask, jnp.float32(NEG), jnp.float32(0.0))  # (B, T)

    # -------- lane / sublane friendly padding: T, A -> multiples of 128 --------
    Tp = ((T + 127) // 128) * 128
    Ap = ((A + 127) // 128) * 128
    if Tp != T:
        dt = Tp - T
        memory = jnp.pad(memory, ((0, 0), (0, dt), (0, 0)))
        processed_memory = jnp.pad(processed_memory, ((0, 0), (0, dt), (0, 0)))
        im2col = jnp.pad(im2col, ((0, 0), (0, dt), (0, 0)))
        bias = jnp.pad(bias, ((0, 0), (0, dt)), constant_values=NEG)
    if Ap != A:
        da = Ap - A
        q_proj = jnp.pad(q_proj, ((0, 0), (0, da)))
        processed_memory = jnp.pad(processed_memory, ((0, 0), (0, 0), (0, da)))
        wfused = jnp.pad(wfused, ((0, 0), (0, da)))
        wscore_p = jnp.pad(wscore, ((0, 0), (0, da)))
    else:
        wscore_p = wscore

    # large HBM-resident inputs in bf16 (halves HBM traffic; accumulation stays f32)
    mem_bf = memory.astype(jnp.bfloat16)
    pmem_bf = processed_memory.astype(jnp.bfloat16)
    im2col_bf = im2col.astype(jnp.bfloat16)
    bias_bf = bias.astype(jnp.bfloat16)
    wfused_bf = wfused.astype(jnp.bfloat16)
    wscore_row = wscore_p.astype(jnp.float32).reshape(1, Ap)
    bscore_s = bscore.astype(jnp.float32).reshape(1,)

    # -------- chip-aware batch blocking --------
    vmem_limit, budget, two_tc = _vmem_config()
    per_row = _per_row_vmem_bytes(Tp, E, Ap, K2)
    Bt = _choose_batch_block(B, per_row, budget, two_tc)
    n_steps = -(-B // Bt)
    Bp = n_steps * Bt
    if Bp != B:                                  # pad batch; padded rows are fully masked
        padb = Bp - B
        q_proj = jnp.pad(q_proj, ((0, padb), (0, 0)))
        pmem_bf = jnp.pad(pmem_bf, ((0, padb), (0, 0), (0, 0)))
        im2col_bf = jnp.pad(im2col_bf, ((0, padb), (0, 0), (0, 0)))
        mem_bf = jnp.pad(mem_bf, ((0, padb), (0, 0), (0, 0)))
        bias_bf = jnp.pad(bias_bf, ((0, padb), (0, 0)), constant_values=NEG)

    ctx, attw = pl.pallas_call(
        attention_kernel,
        out_shape=(jax.ShapeDtypeStruct((Bp, E), jnp.float32),
                   jax.ShapeDtypeStruct((Bp, Tp), jnp.float32)),
        grid=(n_steps,),
        in_specs=[
            pl.BlockSpec((Bt, Ap), lambda b: (b, 0)),            # q_proj (f32)
            pl.BlockSpec((Bt, Tp, Ap), lambda b: (b, 0, 0)),     # processed_memory (bf16)
            pl.BlockSpec((Bt, Tp, K2), lambda b: (b, 0, 0)),     # im2col location features (bf16)
            pl.BlockSpec((Bt, Tp), lambda b: (b, 0)),            # additive mask bias (bf16)
            pl.BlockSpec((Bt, Tp, E), lambda b: (b, 0, 0)),      # memory (bf16)
            pl.BlockSpec((K2, Ap), lambda b: (0, 0)),            # fused conv+dense weight
            pl.BlockSpec((1, Ap), lambda b: (0, 0)),             # score weight row
            pl.BlockSpec(memory_space=pltpu.MemorySpace.SMEM),   # score bias scalar in SMEM
        ],
        out_specs=(pl.BlockSpec((Bt, E), lambda b: (b, 0)),
                   pl.BlockSpec((Bt, Tp), lambda b: (b, 0))),
        compiler_params=pltpu.CompilerParams(
            dimension_semantics=("parallel",),
            vmem_limit_bytes=vmem_limit),
    )(q_proj, pmem_bf, im2col_bf, bias_bf, mem_bf, wfused_bf, wscore_row, bscore_s)

    return ctx[:B], attw[:B, :T]


# ----------------------------- params & references ---------------------------

def xavier_uniform(key, shape, fan_in, fan_out, gain):
    bound = gain * sqrt(6.0 / (fan_in + fan_out))
    return jax.random.uniform(key, shape, jnp.float32, -bound, bound)


def init_params(key, attention_rnn_dim, embedding_dim, attention_dim, n_filters, kernel_size):
    R, A, F, K = attention_rnn_dim, attention_dim, n_filters, kernel_size
    k1, k2, k3, k4, k5 = jax.random.split(key, 5)
    gain_tanh = 5.0 / 3.0
    wq = xavier_uniform(k1, (A, R), R, A, gain_tanh)          # query_linear, no bias
    wconv = xavier_uniform(k2, (F, 2, K), 2 * K, F * K, 1.0)  # Conv1d(2,F,K), no bias
    wloc = xavier_uniform(k3, (A, F), F, A, gain_tanh)        # location dense, no bias
    wscore = xavier_uniform(k4, (1, A), A, 1, 1.0)            # score_dot weight
    bscore = jax.random.uniform(k5, (1,), jnp.float32, -1.0 / sqrt(A), 1.0 / sqrt(A))
    # NOTE: memory_linear exists in Attention.__init__ but is unused in forward
    # (processed_memory is already an input), so it has no kernel counterpart.
    return wq, wconv, wloc, wscore, bscore


def reference_forward_f32(query, memory, processed_memory, awc, mask, params):
    """Full-f32 semantics of the PyTorch module."""
    wq, wconv, wloc, wscore, bscore = params
    B, T, E = memory.shape
    K = wconv.shape[2]
    pad = (K - 1) // 2
    q_proj = (query @ wq.T)[:, None, :]
    awc_pad = jnp.pad(awc, ((0, 0), (0, 0), (pad, pad)))
    shifts = jnp.stack([awc_pad[:, :, k:k + T] for k in range(K)], axis=-1)   # (B,2,T,K)
    conv = jnp.einsum('bctk,fck->btf', shifts, wconv)
    local_proj = conv @ wloc.T
    e = jnp.tanh(q_proj + local_proj + processed_memory)
    scores = jnp.einsum('bta,a->bt', e, wscore[0]) + bscore[0]
    scores = jnp.where(mask, -jnp.inf, scores)
    w = jax.nn.softmax(scores, axis=1)
    ctx = jnp.einsum('bt,bte->be', w, memory)
    return ctx, w


def reference_forward_matched(query, memory, processed_memory, awc, mask, params):
    """Same math, mirroring the kernel's precision choices (bf16 HBM operands and
    a bf16-product / f32-accumulation context reduction)."""
    bf = lambda x: x.astype(jnp.bfloat16).astype(jnp.float32)
    wq, wconv, wloc, wscore, bscore = params
    B, T, E = memory.shape
    A = processed_memory.shape[-1]
    K = wconv.shape[2]
    pad = (K - 1) // 2
    q_proj = (query @ wq.T)[:, None, :]
    wfused = bf(jnp.einsum('fck,af->kca', wconv, wloc).reshape(2 * K, A))
    awc_pad = jnp.pad(awc, ((0, 0), (0, 0), (pad, pad)))
    cols = jnp.stack([awc_pad[:, :, k:k + T] for k in range(K)], axis=1)
    im2col = bf(jnp.transpose(cols, (0, 3, 1, 2)).reshape(B, T, 2 * K))
    local_proj = jnp.einsum('btk,ka->bta', im2col, wfused)
    e = jnp.tanh(q_proj + local_proj + bf(processed_memory))
    scores = jnp.einsum('bta,a->bt', e, wscore[0]) + bscore[0]
    scores = jnp.where(mask, -jnp.inf, scores)
    w = jax.nn.softmax(scores, axis=1)
    prod = (w.astype(jnp.bfloat16)[:, :, None]
            * memory.astype(jnp.bfloat16)).astype(jnp.float32)
    ctx = jnp.sum(prod, axis=1)
    return ctx, w


# ----------------------------- self-test --------------------------------------

if __name__ == "__main__":
    B, T = 2, 8
    attention_rnn_dim = 32      # R
    embedding_dim = 32          # E
    attention_dim = 16          # A
    location_n_filters = 8      # F
    location_kernel_size = 3    # K (odd, as in Tacotron2)

    key = jax.random.PRNGKey(0)
    kp, kq, km, kpm, kaw = jax.random.split(key, 5)

    params = init_params(kp, attention_rnn_dim, embedding_dim, attention_dim,
                         location_n_filters, location_kernel_size)

    query = jax.random.normal(kq, (B, attention_rnn_dim), jnp.float32)
    memory = jax.random.normal(km, (B, T, embedding_dim), jnp.float32)
    processed_memory = jax.random.normal(kpm, (B, T, attention_dim), jnp.float32)
    attention_weights_cat = jax.nn.softmax(
        jax.random.normal(kaw, (B, 2, T), jnp.float32), axis=-1)
    lengths = jnp.array([8, 6], dtype=jnp.int32)
    reverse_memory_mask = jnp.arange(T)[None, :] >= lengths[:, None]   # (B, T) bool

    ctx, attw = attention_forward(query, memory, processed_memory,
                                  attention_weights_cat, reverse_memory_mask, params)
    jax.block_until_ready((ctx, attw))

    # check against a reference mirroring the kernel's precision choices
    ctx_m, attw_m = reference_forward_matched(query, memory, processed_memory,
                                              attention_weights_cat,
                                              reverse_memory_mask, params)
    assert jnp.allclose(attw, attw_m, atol=1e-4, rtol=1e-4), "weights mismatch (matched ref)"
    # context uses bf16 products in-kernel -> allow a couple of bf16 ULPs
    assert jnp.allclose(ctx, ctx_m, atol=2e-3, rtol=2e-3), "context mismatch (matched ref)"

    # loose sanity check against the full-f32 module semantics
    ctx_f, attw_f = reference_forward_f32(query, memory, processed_memory,
                                          attention_weights_cat,
                                          reverse_memory_mask, params)
    assert jnp.allclose(ctx, ctx_f, atol=1e-1, rtol=1e-1), "context mismatch (f32 ref)"
    assert jnp.allclose(attw, attw_f, atol=1e-1, rtol=1e-1), "weights mismatch (f32 ref)"
    assert jnp.allclose(jnp.sum(attw, axis=1), 1.0, atol=1e-5), "weights do not sum to 1"

    print("KERNEL_OK")
</pallas_src>

<mosaic_0001>
module attributes {stable_mosaic.version = 11 : i64} {
  func.func @attention_kernel(%arg0: i32, %arg1: memref<2x128xf32, #tpu.memory_space<vmem>>, %arg2: memref<2x128x128xbf16, #tpu.memory_space<vmem>>, %arg3: memref<2x128x6xbf16, #tpu.memory_space<vmem>>, %arg4: memref<2x128xbf16, #tpu.memory_space<vmem>>, %arg5: memref<2x128x32xbf16, #tpu.memory_space<vmem>>, %arg6: memref<6x128xbf16, #tpu.memory_space<vmem>>, %arg7: memref<1x128xf32, #tpu.memory_space<vmem>>, %arg8: memref<1xf32, #tpu.memory_space<smem>>, %arg9: memref<2x32xf32, #tpu.memory_space<vmem>>, %arg10: memref<2x128xf32, #tpu.memory_space<vmem>>) attributes {dimension_semantics = [#tpu.dimension_semantics<parallel>], iteration_bounds = array<i64: 1>, scalar_prefetch = 0 : i64, scratch_operands = 0 : i64, tpu.core_type = #tpu.core_type<tc>, window_params = [{transform_indices = @transform_0, window_bounds = array<i64: 2, 128>}, {transform_indices = @transform_1, window_bounds = array<i64: 2, 128, 128>}, {transform_indices = @transform_2, window_bounds = array<i64: 2, 128, 6>}, {transform_indices = @transform_3, window_bounds = array<i64: 2, 128>}, {transform_indices = @transform_4, window_bounds = array<i64: 2, 128, 32>}, {pipeline_mode = #tpu.pipeline_mode<synchronous>, transform_indices = @transform_5, window_bounds = array<i64: 6, 128>}, {pipeline_mode = #tpu.pipeline_mode<synchronous>, transform_indices = @transform_6, window_bounds = array<i64: 1, 128>}, {transform_indices = @transform_7, window_bounds = array<i64: 1>}, {transform_indices = @transform_8, window_bounds = array<i64: 2, 32>}, {transform_indices = @transform_9, window_bounds = array<i64: 2, 128>}]} {
    %c0 = arith.constant 0 : index
    %c0_0 = arith.constant 0 : index
    %c0_1 = arith.constant 0 : index
    %0 = vector.load %arg3[%c0, %c0_0, %c0_1] : memref<2x128x6xbf16, #tpu.memory_space<vmem>>, vector<2x128x6xbf16>
    %1 = vector.shape_cast %0 : vector<2x128x6xbf16> to vector<256x6xbf16>
    %c0_2 = arith.constant 0 : index
    %c0_3 = arith.constant 0 : index
    %2 = vector.load %arg6[%c0_2, %c0_3] : memref<6x128xbf16, #tpu.memory_space<vmem>>, vector<6x128xbf16>
    %cst = arith.constant dense<0.000000e+00> : vector<256x128xf32>
    %3 = tpu.matmul %1, %2, %cst {dimension_numbers = #tpu.dot_dimension_numbers<[1], [0], [0], [1], [0, 0, 1, 1], [], []>} : vector<256x6xbf16>, vector<6x128xbf16>, vector<256x128xf32> -> vector<256x128xf32>
    %4 = vector.shape_cast %3 : vector<256x128xf32> to vector<2x128x128xf32>
    %c0_4 = arith.constant 0 : index
    %c0_5 = arith.constant 0 : index
    %5 = vector.load %arg1[%c0_4, %c0_5] : memref<2x128xf32, #tpu.memory_space<vmem>>, vector<2x128xf32>
    %6 = vector.shape_cast %5 : vector<2x128xf32> to vector<2x1x128xf32>
    %7 = vector.broadcast %6 : vector<2x1x128xf32> to vector<2x128x128xf32>
    %8 = arith.addf %7, %4 : vector<2x128x128xf32>
    %c0_6 = arith.constant 0 : index
    %c0_7 = arith.constant 0 : index
    %c0_8 = arith.constant 0 : index
    %9 = vector.load %arg2[%c0_6, %c0_7, %c0_8] : memref<2x128x128xbf16, #tpu.memory_space<vmem>>, vector<2x128x128xbf16>
    %10 = arith.extf %9 : vector<2x128x128xbf16> to vector<2x128x128xf32>
    %11 = arith.addf %8, %10 : vector<2x128x128xf32>
    %12 = math.tanh %11 : vector<2x128x128xf32>
    %c0_9 = arith.constant 0 : index
    %c0_10 = arith.constant 0 : index
    %13 = vector.load %arg7[%c0_9, %c0_10] : memref<1x128xf32, #tpu.memory_space<vmem>>, vector<1x128xf32>
    %14 = vector.shape_cast %13 : vector<1x128xf32> to vector<1x1x128xf32>
    %15 = vector.broadcast %14 : vector<1x1x128xf32> to vector<2x128x128xf32>
    %16 = arith.mulf %12, %15 : vector<2x128x128xf32>
    %cst_11 = arith.constant dense<0.000000e+00> : vector<2x128xf32>
    %17 = vector.multi_reduction <add>, %16, %cst_11 [2] : vector<2x128x128xf32> to vector<2x128xf32>
    %c0_12 = arith.constant 0 : index
    %18 = memref.load %arg8[%c0_12] : memref<1xf32, #tpu.memory_space<smem>>
    %19 = vector.broadcast %18 : f32 to vector<2x128xf32>
    %20 = arith.addf %17, %19 : vector<2x128xf32>
    %c0_13 = arith.constant 0 : index
    %c0_14 = arith.constant 0 : index
    %21 = vector.load %arg4[%c0_13, %c0_14] : memref<2x128xbf16, #tpu.memory_space<vmem>>, vector<2x128xbf16>
    %22 = arith.extf %21 : vector<2x128xbf16> to vector<2x128xf32>
    %23 = arith.addf %20, %22 : vector<2x128xf32>
    %cst_15 = arith.constant dense<0xFF800000> : vector<2xf32>
    %24 = vector.multi_reduction <maximumf>, %23, %cst_15 [1] : vector<2x128xf32> to vector<2xf32>
    %25 = vector.shape_cast %24 : vector<2xf32> to vector<2x1xf32>
    %26 = vector.broadcast %25 : vector<2x1xf32> to vector<2x128xf32>
    %27 = arith.subf %23, %26 : vector<2x128xf32>
    %28 = math.exp %27 : vector<2x128xf32>
    %cst_16 = arith.constant dense<0.000000e+00> : vector<2xf32>
    %29 = vector.multi_reduction <add>, %28, %cst_16 [1] : vector<2x128xf32> to vector<2xf32>
    %30 = vector.shape_cast %29 : vector<2xf32> to vector<2x1xf32>
    %31 = tpu.reciprocal %30 : vector<2x1xf32> -> vector<2x1xf32>
    %32 = vector.broadcast %31 : vector<2x1xf32> to vector<2x128xf32>
    %33 = arith.mulf %28, %32 : vector<2x128xf32>
    %c0_17 = arith.constant 0 : index
    %c0_18 = arith.constant 0 : index
    %34 = vector.load %arg10[%c0_17, %c0_18] : memref<2x128xf32, #tpu.memory_space<vmem>>, vector<2x128xf32>
    tpu.vector_store %arg10[%c0_17, %c0_18], %33 {strides = array<i32>} : memref<2x128xf32, #tpu.memory_space<vmem>>, vector<2x128xf32>,
    %35 = arith.truncf %33 : vector<2x128xf32> to vector<2x128xbf16>
    %36 = vector.shape_cast %35 : vector<2x128xbf16> to vector<2x128x1xbf16>
    %c0_19 = arith.constant 0 : index
    %c0_20 = arith.constant 0 : index
    %c0_21 = arith.constant 0 : index
    %37 = vector.load %arg5[%c0_19, %c0_20, %c0_21] : memref<2x128x32xbf16, #tpu.memory_space<vmem>>, vector<2x128x32xbf16>
    %38 = vector.broadcast %36 : vector<2x128x1xbf16> to vector<2x128x32xbf16>
    %39 = arith.mulf %38, %37 : vector<2x128x32xbf16>
    %40 = arith.extf %39 : vector<2x128x32xbf16> to vector<2x128x32xf32>
    %cst_22 = arith.constant dense<0.000000e+00> : vector<2x32xf32>
    %41 = vector.multi_reduction <add>, %40, %cst_22 [1] : vector<2x128x32xf32> to vector<2x32xf32>
    %c0_23 = arith.constant 0 : index
    %c0_24 = arith.constant 0 : index
    %42 = vector.load %arg9[%c0_23, %c0_24] : memref<2x32xf32, #tpu.memory_space<vmem>>, vector<2x32xf32>
    tpu.vector_store %arg9[%c0_23, %c0_24], %41 {strides = array<i32>} : memref<2x32xf32, #tpu.memory_space<vmem>>, vector<2x32xf32>,
    return
  }
  func.func @transform_0(%arg0: i32) -> (i32, i32) {
    %c0_i32 = arith.constant 0 : i32
    %c0_i32_0 = arith.constant 0 : i32
    return %arg0, %c0_i32 : i32, i32
  }
  func.func @transform_1(%arg0: i32) -> (i32, i32, i32) {
    %c0_i32 = arith.constant 0 : i32
    %c0_i32_0 = arith.constant 0 : i32
    %c0_i32_1 = arith.constant 0 : i32
    return %arg0, %c0_i32, %c0_i32_0 : i32, i32, i32
  }
  func.func @transform_2(%arg0: i32) -> (i32, i32, i32) {
    %c0_i32 = arith.constant 0 : i32
    %c0_i32_0 = arith.constant 0 : i32
    %c0_i32_1 = arith.constant 0 : i32
    return %arg0, %c0_i32, %c0_i32_0 : i32, i32, i32
  }
  func.func @transform_3(%arg0: i32) -> (i32, i32) {
    %c0_i32 = arith.constant 0 : i32
    %c0_i32_0 = arith.constant 0 : i32
    return %arg0, %c0_i32 : i32, i32
  }
  func.func @transform_4(%arg0: i32) -> (i32, i32, i32) {
    %c0_i32 = arith.constant 0 : i32
    %c0_i32_0 = arith.constant 0 : i32
    %c0_i32_1 = arith.constant 0 : i32
    return %arg0, %c0_i32, %c0_i32_0 : i32, i32, i32
  }
  func.func @transform_5(%arg0: i32) -> (i32, i32) {
    %c0_i32 = arith.constant 0 : i32
    %c0_i32_0 = arith.constant 0 : i32
    %c0_i32_1 = arith.constant 0 : i32
    return %c0_i32, %c0_i32_0 : i32, i32
  }
  func.func @transform_6(%arg0: i32) -> (i32, i32) {
    %c0_i32 = arith.constant 0 : i32
    %c0_i32_0 = arith.constant 0 : i32
    %c0_i32_1 = arith.constant 0 : i32
    return %c0_i32, %c0_i32_0 : i32, i32
  }
  func.func @transform_7(%arg0: i32) -> i32 {
    %c0_i32 = arith.constant 0 : i32
    %c0_i32_0 = arith.constant 0 : i32
    return %c0_i32 : i32
  }
  func.func @transform_8(%arg0: i32) -> (i32, i32) {
    %c0_i32 = arith.constant 0 : i32
    %c0_i32_0 = arith.constant 0 : i32
    return %arg0, %c0_i32 : i32, i32
  }
  func.func @transform_9(%arg0: i32) -> (i32, i32) {
    %c0_i32 = arith.constant 0 : i32
    %c0_i32_0 = arith.constant 0 : i32
    return %arg0, %c0_i32 : i32, i32
  }
}

</mosaic_0001>

<llo_original>
// kernel: tpu_custom_call.1
$region0: #{tpu_custom_call.1}
  #allocation0 [shape = 'u32[]', space=smem, size = 0x4, offset = 0x4, fixed_abs, tag = 'smem constant byte address 0x4 - core index']
  #allocation1 [shape = 'u32[144,128]{1,0:T(1,128)}', space=vmem, size = 0x12000, scoped, tag = 'internal scratch']
  #allocation2 [shape = 'f32[1]{0:T(128)S(6)}', space=smem, size = 0x200, scoped, tag = 'scoped memory for tpu_custom_call.1']
  %s0 = inlined_call_operand.hbm [shape: f32[2,128], index: 0, kind: input, shape index: {}]
  %s1 = inlined_call_operand.hbm [shape: bf16[2,128,128], index: 1, kind: input, shape index: {}]
  %s2 = inlined_call_operand.hbm [shape: bf16[2,128,6], index: 2, kind: input, shape index: {}]
  %s3 = inlined_call_operand.hbm [shape: bf16[2,128], index: 3, kind: input, shape index: {}]
  %s4 = inlined_call_operand.hbm [shape: bf16[2,128,32], index: 4, kind: input, shape index: {}]
  %s5 = inlined_call_operand.hbm [shape: bf16[6,128], index: 5, kind: input, shape index: {}]
  %s6 = inlined_call_operand.hbm [shape: f32[1,128], index: 6, kind: input, shape index: {}]
  %s7 = inlined_call_operand.<no memory space> [shape: f32[1], index: 7, kind: input, shape index: {}]
  %s8 = inlined_call_operand.hbm [shape: f32[2,32], index: 8, kind: output, shape index: {0}]
  %s9 = inlined_call_operand.hbm [shape: f32[2,128], index: 9, kind: output, shape index: {1}]
  %10 = xla_tuple %s8, %s9
  %s11 = sld [smem:[#allocation0]]
  $region78: #{tpu_custom_call.1} parent=0
    _
  %s13 = ssub.s32 1, %s11
  %s14 = scalar_select 0, %s13, %s11
  %15 = sst [smem:[#allocation2]] %s7
  $region1: #{tpu_custom_call.1} parent=0
    #allocation3 [shape = 'u8[1024]{0}', space=vmem, size = 0x400, scoped, tag = 'input window, operand 0, single buffered']
    #allocation4 [shape = 's32[1]{0}', space=sflag, size = 0x4, scoped, tag = 'scoped memory for tpu_custom_call.1']
    #allocation5 [shape = 's32[1]{0}', space=sflag, size = 0x4, scoped, tag = 'scoped memory for tpu_custom_call.1']
    #allocation6 [shape = 'u8[65536]{0}', space=vmem, size = 0x10000, scoped, tag = 'input window, operand 1, single buffered']
    #allocation7 [shape = 's32[1]{0}', space=sflag, size = 0x4, scoped, tag = 'scoped memory for tpu_custom_call.1']
    #allocation8 [shape = 'u8[65536]{0}', space=vmem, size = 0x10000, scoped, tag = 'input window, operand 2, single buffered']
    #allocation9 [shape = 'u8[512]{0}', space=vmem, size = 0x400, scoped, tag = 'input window, operand 3, single buffered']
    #allocation10 [shape = 's32[1]{0}', space=sflag, size = 0x4, scoped, tag = 'scoped memory for tpu_custom_call.1']
    #allocation11 [shape = 'u8[65536]{0}', space=vmem, size = 0x10000, scoped, tag = 'input window, operand 4, single buffered']
    #allocation12 [shape = 'u8[2048]{0}', space=vmem, size = 0x800, scoped, tag = 'input window, operand 5, single buffered']
    #allocation13 [shape = 's32[1]{0}', space=sflag, size = 0x4, scoped, tag = 'scoped memory for tpu_custom_call.1']
    #allocation14 [shape = 'u8[512]{0}', space=vmem, size = 0x400, scoped, tag = 'input window, operand 6, single buffered']
    #allocation15 [shape = 'u8[1024]{0}', space=vmem, size = 0x400, scoped, tag = 'output window, operand 0, single buffered']
    #allocation16 [shape = 'u8[1024]{0}', space=vmem, size = 0x400, scoped, tag = 'output window, operand 1, single buffered']
    #allocation17 [shape = 's32[1]{0}', space=sflag, size = 0x4, scoped, tag = 'scoped memory for tpu_custom_call.1']
    %16 = vsyncpa [#allocation4], 0
    %17 = vsyncpa [#allocation7], 0
    %18 = vsyncpa [#allocation10], 0
    %19 = vsyncpa [#allocation13], 0
    %20 = vsyncpa [#allocation5], 0
    %21 = vsyncpa [#allocation17], 0
    // Predicated region
    $region2: #{tpu_custom_call.1} parent=1 // pred_check
      _
    $region3: #{tpu_custom_call.1} parent=1 // pred_check_branch
      %23 = sbr.rel (0) target = $region5
    $region4: #{tpu_custom_call.1} parent=1 // pred_region
      %s25 = ssub.s32 32, 32
      %26 = vsyncadd [#allocation4], %s25
      %s28 = sshll.u32 [#allocation3], 4
      %s29 = int_to_ptr.vmem [resolvable:$true] %s28
      %31 = dma.hbm_to_vmem [thread:$0]  %s0, 32, %s29, [#allocation4]
    $region5: #{tpu_custom_call.1} parent=1 // pred_fallthru
      _
    // Predicated region
    $region6: #{tpu_custom_call.1} parent=1 // pred_check
      _
    $region7: #{tpu_custom_call.1} parent=1 // pred_check_branch
      %33 = sbr.rel (0) target = $region9
    $region8: #{tpu_custom_call.1} parent=1 // pred_region
      %s35 = ssub.s32 2048, 2048
      %36 = vsyncadd [#allocation7], %s35
      %s37 = sshll.u32 [#allocation6], 4
      %s38 = int_to_ptr.vmem [resolvable:$true] %s37
      %43 = dma.hbm_to_vmem [thread:$0]  %s1, 2048, %s38, [#allocation7], 64, 64, 4
    $region9: #{tpu_custom_call.1} parent=1 // pred_fallthru
      _
    // Predicated region
    $region10: #{tpu_custom_call.1} parent=1 // pred_check
      _
    $region11: #{tpu_custom_call.1} parent=1 // pred_check_branch
      %45 = sbr.rel (0) target = $region13
    $region12: #{tpu_custom_call.1} parent=1 // pred_region
      %s47 = ssub.s32 2048, 2048
      %48 = vsyncadd [#allocation7], %s47
      %s49 = sshll.u32 [#allocation8], 4
      %s50 = int_to_ptr.vmem [resolvable:$true] %s49
      %55 = dma.hbm_to_vmem [thread:$0]  %s2, 2048, %s50, [#allocation7], 64, 64, 4
    $region13: #{tpu_custom_call.1} parent=1 // pred_fallthru
      _
    // Predicated region
    $region14: #{tpu_custom_call.1} parent=1 // pred_check
      _
    $region15: #{tpu_custom_call.1} parent=1 // pred_check_branch
      %57 = sbr.rel (0) target = $region17
    $region16: #{tpu_custom_call.1} parent=1 // pred_region
      %s59 = ssub.s32 16, 16
      %60 = vsyncadd [#allocation10], %s59
      %s62 = sshll.u32 [#allocation9], 4
      %s63 = int_to_ptr.vmem [resolvable:$true] %s62
      %65 = dma.hbm_to_vmem [thread:$0]  %s3, 16, %s63, [#allocation10]
    $region17: #{tpu_custom_call.1} parent=1 // pred_fallthru
      _
    // Predicated region
    $region18: #{tpu_custom_call.1} parent=1 // pred_check
      _
    $region19: #{tpu_custom_call.1} parent=1 // pred_check_branch
      %67 = sbr.rel (0) target = $region21
    $region20: #{tpu_custom_call.1} parent=1 // pred_region
      %s69 = ssub.s32 2048, 2048
      %70 = vsyncadd [#allocation10], %s69
      %s71 = sshll.u32 [#allocation11], 4
      %s72 = int_to_ptr.vmem [resolvable:$true] %s71
      %77 = dma.hbm_to_vmem [thread:$0]  %s4, 2048, %s72, [#allocation10], 64, 64, 4
    $region21: #{tpu_custom_call.1} parent=1 // pred_fallthru
      _
    // Predicated region
    $region22: #{tpu_custom_call.1} parent=1 // pred_check
      _
    $region23: #{tpu_custom_call.1} parent=1 // pred_check_branch
      %79 = sbr.rel (0) target = $region25
    $region24: #{tpu_custom_call.1} parent=1 // pred_region
      %s81 = ssub.s32 64, 64
      %82 = vsyncadd [#allocation13], %s81
      %s84 = sshll.u32 [#allocation12], 4
      %s85 = int_to_ptr.vmem [resolvable:$true] %s84
      %87 = dma.hbm_to_vmem [thread:$0]  %s5, 64, %s85, [#allocation13]
    $region25: #{tpu_custom_call.1} parent=1 // pred_fallthru
      _
    // Predicated region
    $region26: #{tpu_custom_call.1} parent=1 // pred_check
      _
    $region27: #{tpu_custom_call.1} parent=1 // pred_check_branch
      %89 = sbr.rel (0) target = $region29
    $region28: #{tpu_custom_call.1} parent=1 // pred_region
      %s91 = ssub.s32 16, 16
      %92 = vsyncadd [#allocation13], %s91
      %s94 = sshll.u32 [#allocation14], 4
      %s95 = int_to_ptr.vmem [resolvable:$true] %s94
      %97 = dma.hbm_to_vmem [thread:$0]  %s6, 16, %s95, [#allocation13]
    $region29: #{tpu_custom_call.1} parent=1 // pred_fallthru
      _
    // Predicated region
    $region30: #{tpu_custom_call.1} parent=1 // pred_check
      _
    $region31: #{tpu_custom_call.1} parent=1 // pred_check_branch
      %99 = sbr.rel (0) target = $region33
    $region32: #{tpu_custom_call.1} parent=1 // pred_region
      _
    $region33: #{tpu_custom_call.1} parent=1 // pred_fallthru
      _
    // Predicated region
    $region34: #{tpu_custom_call.1} parent=1 // pred_check
      _
    $region35: #{tpu_custom_call.1} parent=1 // pred_check_branch
      %101 = sbr.rel (0) target = $region37
    $region36: #{tpu_custom_call.1} parent=1 // pred_region
      %102 = dma.done [#allocation4], 32
    $region37: #{tpu_custom_call.1} parent=1 // pred_fallthru
      _
    // Predicated region
    $region38: #{tpu_custom_call.1} parent=1 // pred_check
      _
    $region39: #{tpu_custom_call.1} parent=1 // pred_check_branch
      %104 = sbr.rel (0) target = $region41
    $region40: #{tpu_custom_call.1} parent=1 // pred_region
      %105 = dma.done [#allocation7], 2048
    $region41: #{tpu_custom_call.1} parent=1 // pred_fallthru
      _
    // Predicated region
    $region42: #{tpu_custom_call.1} parent=1 // pred_check
      _
    $region43: #{tpu_custom_call.1} parent=1 // pred_check_branch
      %107 = sbr.rel (0) target = $region45
    $region44: #{tpu_custom_call.1} parent=1 // pred_region
      %108 = dma.done [#allocation7], 2048
    $region45: #{tpu_custom_call.1} parent=1 // pred_fallthru
      _
    // Predicated region
    $region46: #{tpu_custom_call.1} parent=1 // pred_check
      _
    $region47: #{tpu_custom_call.1} parent=1 // pred_check_branch
      %110 = sbr.rel (0) target = $region49
    $region48: #{tpu_custom_call.1} parent=1 // pred_region
      %111 = dma.done [#allocation10], 16
    $region49: #{tpu_custom_call.1} parent=1 // pred_fallthru
      _
    // Predicated region
    $region50: #{tpu_custom_call.1} parent=1 // pred_check
      _
    $region51: #{tpu_custom_call.1} parent=1 // pred_check_branch
      %113 = sbr.rel (0) target = $region53
    $region52: #{tpu_custom_call.1} parent=1 // pred_region
      %114 = dma.done [#allocation10], 2048
    $region53: #{tpu_custom_call.1} parent=1 // pred_fallthru
      _
    // Predicated region
    $region54: #{tpu_custom_call.1} parent=1 // pred_check
      _
    $region55: #{tpu_custom_call.1} parent=1 // pred_check_branch
      %116 = sbr.rel (0) target = $region57
    $region56: #{tpu_custom_call.1} parent=1 // pred_region
      %117 = dma.done [#allocation13], 64
    $region57: #{tpu_custom_call.1} parent=1 // pred_fallthru
      _
    // Predicated region
    $region58: #{tpu_custom_call.1} parent=1 // pred_check
      _
    $region59: #{tpu_custom_call.1} parent=1 // pred_check_branch
      %119 = sbr.rel (0) target = $region61
    $region60: #{tpu_custom_call.1} parent=1 // pred_region
      %120 = dma.done [#allocation13], 16
    $region61: #{tpu_custom_call.1} parent=1 // pred_fallthru
      _
    %v122 = vld [vmem:[#allocation8] sm:$0xf]
    %v123 = vld [vmem:[#allocation8 + $0x4] sm:$0xf]
    %v124 = vld [vmem:[#allocation8 + $0x8] sm:$0xf]
    %v125 = vld [vmem:[#allocation8 + $0xc] sm:$0xf]
    %v126 = vld [vmem:[#allocation8 + $0x10] sm:$0xf]
    %v127 = vld [vmem:[#allocation8 + $0x14] sm:$0xf]
    %v128 = vld [vmem:[#allocation8 + $0x18] sm:$0xf]
    %v129 = vld [vmem:[#allocation8 + $0x1c] sm:$0xf]
    %v130 = vld [vmem:[#allocation8 + $0x20] sm:$0xf]
    %v131 = vld [vmem:[#allocation8 + $0x24] sm:$0xf]
    %v132 = vld [vmem:[#allocation8 + $0x28] sm:$0xf]
    %v133 = vld [vmem:[#allocation8 + $0x2c] sm:$0xf]
    %v134 = vld [vmem:[#allocation8 + $0x30] sm:$0xf]
    %v135 = vld [vmem:[#allocation8 + $0x34] sm:$0xf]
    %v136 = vld [vmem:[#allocation8 + $0x38] sm:$0xf]
    %v137 = vld [vmem:[#allocation8 + $0x3c] sm:$0xf]
    %v138 = vld [vmem:[#allocation8 + $0x40] sm:$0xf]
    %v139 = vld [vmem:[#allocation8 + $0x44] sm:$0xf]
    %v140 = vld [vmem:[#allocation8 + $0x48] sm:$0xf]
    %v141 = vld [vmem:[#allocation8 + $0x4c] sm:$0xf]
    %v142 = vld [vmem:[#allocation8 + $0x50] sm:$0xf]
    %v143 = vld [vmem:[#allocation8 + $0x54] sm:$0xf]
    %v144 = vld [vmem:[#allocation8 + $0x58] sm:$0xf]
    %v145 = vld [vmem:[#allocation8 + $0x5c] sm:$0xf]
    %v146 = vld [vmem:[#allocation8 + $0x60] sm:$0xf]
    %v147 = vld [vmem:[#allocation8 + $0x64] sm:$0xf]
    %v148 = vld [vmem:[#allocation8 + $0x68] sm:$0xf]
    %v149 = vld [vmem:[#allocation8 + $0x6c] sm:$0xf]
    %v150 = vld [vmem:[#allocation8 + $0x70] sm:$0xf]
    %v151 = vld [vmem:[#allocation8 + $0x74] sm:$0xf]
    %v152 = vld [vmem:[#allocation8 + $0x78] sm:$0xf]
    %v153 = vld [vmem:[#allocation8 + $0x7c] sm:$0xf]
    %v154 = vld [vmem:[#allocation12] sm:$0x7]
    %v187 = vunpack.c.l.b16 %v122
    %v188 = vunpack.c.l.b16 %v123
    %v189 = vunpack.c.l.b16 %v124
    %v190 = vunpack.c.l.b16 %v125
    %v191 = vunpack.c.l.b16 %v126
    %v192 = vunpack.c.l.b16 %v127
    %v193 = vunpack.c.l.b16 %v128
    %v194 = vunpack.c.l.b16 %v129
    %v195 = vunpack.c.l.b16 %v130
    %v196 = vunpack.c.l.b16 %v131
    %v197 = vunpack.c.l.b16 %v132
    %v198 = vunpack.c.l.b16 %v133
    %v199 = vunpack.c.l.b16 %v134
    %v200 = vunpack.c.l.b16 %v135
    %v201 = vunpack.c.l.b16 %v136
    %v202 = vunpack.c.l.b16 %v137
    %v203 = vunpack.c.l.b16 %v138
    %v204 = vunpack.c.l.b16 %v139
    %v205 = vunpack.c.l.b16 %v140
    %v206 = vunpack.c.l.b16 %v141
    %v207 = vunpack.c.l.b16 %v142
    %v208 = vunpack.c.l.b16 %v143
    %v209 = vunpack.c.l.b16 %v144
    %v210 = vunpack.c.l.b16 %v145
    %v211 = vunpack.c.l.b16 %v146
    %v212 = vunpack.c.l.b16 %v147
    %v213 = vunpack.c.l.b16 %v148
    %v214 = vunpack.c.l.b16 %v149
    %v215 = vunpack.c.l.b16 %v150
    %v216 = vunpack.c.l.b16 %v151
    %v217 = vunpack.c.l.b16 %v152
    %v218 = vunpack.c.l.b16 %v153
    %v219 = vpack.c.b16 %v188, %v187
    %v220 = vpack.c.b16 %v190, %v189
    %v221 = vpack.c.b16 %v192, %v191
    %v222 = vpack.c.b16 %v194, %v193
    %v223 = vpack.c.b16 %v196, %v195
    %v224 = vpack.c.b16 %v198, %v197
    %v225 = vpack.c.b16 %v200, %v199
    %v226 = vpack.c.b16 %v202, %v201
    %v227 = vpack.c.b16 %v204, %v203
    %v228 = vpack.c.b16 %v206, %v205
    %v229 = vpack.c.b16 %v208, %v207
    %v230 = vpack.c.b16 %v210, %v209
    %v231 = vpack.c.b16 %v212, %v211
    %v232 = vpack.c.b16 %v214, %v213
    %v233 = vpack.c.b16 %v216, %v215
    %v234 = vpack.c.b16 %v218, %v217
    %vm235 = vcmask 48128
    %v237 = vsel %vm235, %v219, 0
    %v240 = vsel %vm235, %v220, 0
    %v243 = vsel %vm235, %v221, 0
    %v246 = vsel %vm235, %v222, 0
    %v249 = vsel %vm235, %v223, 0
    %v252 = vsel %vm235, %v224, 0
    %v255 = vsel %vm235, %v225, 0
    %v258 = vsel %vm235, %v226, 0
    %v261 = vsel %vm235, %v227, 0
    %v264 = vsel %vm235, %v228, 0
    %v267 = vsel %vm235, %v229, 0
    %v270 = vsel %vm235, %v230, 0
    %v273 = vsel %vm235, %v231, 0
    %v276 = vsel %vm235, %v232, 0
    %v279 = vsel %vm235, %v233, 0
    %v282 = vsel %vm235, %v234, 0
    %vm284 = vcmask 1042432
    %v286 = vsel %vm284, %v154, 0
    %288 = vmatprep.subr.bf16.mxu0 0
    %289 = vmatpush1.bf16.msra.mxu0 %v286
    %290 = vmatprep.subr.bf16.mxu0 0
    %291 = vmatpush1.bf16.msra.mxu0 0
    %292 = vmatprep.subr.bf16.mxu0 0
    %293 = vmatpush1.bf16.msra.mxu0 0
    %294 = vmatprep.subr.bf16.mxu0 0
    %295 = vmatpush1.bf16.msra.mxu0 0
    %296 = vmatprep.subr.bf16.mxu0 0
    %297 = vmatpush1.bf16.msra.mxu0 0
    %298 = vmatprep.subr.bf16.mxu0 0
    %299 = vmatpush1.bf16.msra.mxu0 0
    %300 = vmatprep.subr.bf16.mxu0 0
    %301 = vmatpush1.bf16.msra.mxu0 0
    %302 = vmatprep.subr.bf16.mxu0 0
    %303 = vmatpush1.bf16.msra.mxu0 0
    %304 = vmatprep.subr.bf16.mxu0 0
    %305 = vmatpush1.bf16.msra.mxu0 0
    %306 = vmatprep.subr.bf16.mxu0 0
    %307 = vmatpush1.bf16.msra.mxu0 0
    %308 = vmatprep.subr.bf16.mxu0 0
    %309 = vmatpush1.bf16.msra.mxu0 0
    %310 = vmatprep.subr.bf16.mxu0 0
    %311 = vmatpush1.bf16.msra.mxu0 0
    %312 = vmatprep.subr.bf16.mxu0 0
    %313 = vmatpush1.bf16.msra.mxu0 0
    %314 = vmatprep.subr.bf16.mxu0 0
    %315 = vmatpush1.bf16.msra.mxu0 0
    %316 = vmatprep.subr.bf16.mxu0 0
    %317 = vmatpush1.bf16.msra.mxu0 0
    %318 = vmatprep.subr.bf16.mxu0 0
    %319 = vmatpush1.bf16.msra.mxu0 0
    %320 = vmatprep.mubr.bf16.mxu0 0
    %321 = vmatmul.mubr.bf16.gmra.mrb[0].mxu0 %v237
    %v322 = vpop.f32.mrb[0].mxu0
    %v323 = vadd.f32 0.0, %v322
    %v324 = vpop.f32.mrb[0].mxu0
    %v325 = vpop.f32.mrb[0].mxu0
    %v326 = vadd.f32 0.0, %v325
    %v327 = vpop.f32.mrb[0].mxu0
    %328 = vmatprep.mubr.bf16.mxu0 0
    %329 = vmatmul.mubr.bf16.gmra.mrb[0].mxu0 %v240
    %v330 = vpop.f32.mrb[0].mxu0
    %v331 = vadd.f32 0.0, %v330
    %v332 = vpop.f32.mrb[0].mxu0
    %v333 = vpop.f32.mrb[0].mxu0
    %v334 = vadd.f32 0.0, %v333
    %v335 = vpop.f32.mrb[0].mxu0
    %336 = vmatprep.mubr.bf16.mxu0 0
    %337 = vmatmul.mubr.bf16.gmra.mrb[0].mxu0 %v243
    %v338 = vpop.f32.mrb[0].mxu0
    %v339 = vadd.f32 0.0, %v338
    %v340 = vpop.f32.mrb[0].mxu0
    %v341 = vpop.f32.mrb[0].mxu0
    %v342 = vadd.f32 0.0, %v341
    %v343 = vpop.f32.mrb[0].mxu0
    %344 = vmatprep.mubr.bf16.mxu0 0
    %345 = vmatmul.mubr.bf16.gmra.mrb[0].mxu0 %v246
    %v346 = vpop.f32.mrb[0].mxu0
    %v347 = vadd.f32 0.0, %v346
    %v348 = vpop.f32.mrb[0].mxu0
    %v349 = vpop.f32.mrb[0].mxu0
    %v350 = vadd.f32 0.0, %v349
    %v351 = vpop.f32.mrb[0].mxu0
    %352 = vmatprep.mubr.bf16.mxu0 0
    %353 = vmatmul.mubr.bf16.gmra.mrb[0].mxu0 %v249
    %v354 = vpop.f32.mrb[0].mxu0
    %v355 = vadd.f32 0.0, %v354
    %v356 = vpop.f32.mrb[0].mxu0
    %v357 = vpop.f32.mrb[0].mxu0
    %v358 = vadd.f32 0.0, %v357
    %v359 = vpop.f32.mrb[0].mxu0
    %360 = vmatprep.mubr.bf16.mxu0 0
    %361 = vmatmul.mubr.bf16.gmra.mrb[0].mxu0 %v252
    %v362 = vpop.f32.mrb[0].mxu0
    %v363 = vadd.f32 0.0, %v362
    %v364 = vpop.f32.mrb[0].mxu0
    %v365 = vpop.f32.mrb[0].mxu0
    %v366 = vadd.f32 0.0, %v365
    %v367 = vpop.f32.mrb[0].mxu0
    %368 = vmatprep.mubr.bf16.mxu0 0
    %369 = vmatmul.mubr.bf16.gmra.mrb[0].mxu0 %v255
    %v370 = vpop.f32.mrb[0].mxu0
    %v371 = vadd.f32 0.0, %v370
    %v372 = vpop.f32.mrb[0].mxu0
    %v373 = vpop.f32.mrb[0].mxu0
    %v374 = vadd.f32 0.0, %v373
    %v375 = vpop.f32.mrb[0].mxu0
    %376 = vmatprep.mubr.bf16.mxu0 0
    %377 = vmatmul.mubr.bf16.gmra.mrb[0].mxu0 %v258
    %v378 = vpop.f32.mrb[0].mxu0
    %v379 = vadd.f32 0.0, %v378
    %v380 = vpop.f32.mrb[0].mxu0
    %v381 = vpop.f32.mrb[0].mxu0
    %v382 = vadd.f32 0.0, %v381
    %v383 = vpop.f32.mrb[0].mxu0
    %384 = vmatprep.mubr.bf16.mxu0 0
    %385 = vmatmul.mubr.bf16.gmra.mrb[0].mxu0 %v261
    %v386 = vpop.f32.mrb[0].mxu0
    %v387 = vadd.f32 0.0, %v386
    %v388 = vpop.f32.mrb[0].mxu0
    %v389 = vpop.f32.mrb[0].mxu0
    %v390 = vadd.f32 0.0, %v389
    %v391 = vpop.f32.mrb[0].mxu0
    %392 = vmatprep.mubr.bf16.mxu0 0
    %393 = vmatmul.mubr.bf16.gmra.mrb[0].mxu0 %v264
    %v394 = vpop.f32.mrb[0].mxu0
    %v395 = vadd.f32 0.0, %v394
    %v396 = vpop.f32.mrb[0].mxu0
    %v397 = vpop.f32.mrb[0].mxu0
    %v398 = vadd.f32 0.0, %v397
    %v399 = vpop.f32.mrb[0].mxu0
    %400 = vmatprep.mubr.bf16.mxu0 0
    %401 = vmatmul.mubr.bf16.gmra.mrb[0].mxu0 %v267
    %v402 = vpop.f32.mrb[0].mxu0
    %v403 = vadd.f32 0.0, %v402
    %v404 = vpop.f32.mrb[0].mxu0
    %v405 = vpop.f32.mrb[0].mxu0
    %v406 = vadd.f32 0.0, %v405
    %v407 = vpop.f32.mrb[0].mxu0
    %408 = vmatprep.mubr.bf16.mxu0 0
    %409 = vmatmul.mubr.bf16.gmra.mrb[0].mxu0 %v270
    %v410 = vpop.f32.mrb[0].mxu0
    %v411 = vadd.f32 0.0, %v410
    %v412 = vpop.f32.mrb[0].mxu0
    %v413 = vpop.f32.mrb[0].mxu0
    %v414 = vadd.f32 0.0, %v413
    %v415 = vpop.f32.mrb[0].mxu0
    %416 = vmatprep.mubr.bf16.mxu0 0
    %417 = vmatmul.mubr.bf16.gmra.mrb[0].mxu0 %v273
    %v418 = vpop.f32.mrb[0].mxu0
    %v419 = vadd.f32 0.0, %v418
    %v420 = vpop.f32.mrb[0].mxu0
    %v421 = vpop.f32.mrb[0].mxu0
    %v422 = vadd.f32 0.0, %v421
    %v423 = vpop.f32.mrb[0].mxu0
    %424 = vmatprep.mubr.bf16.mxu0 0
    %425 = vmatmul.mubr.bf16.gmra.mrb[0].mxu0 %v276
    %v426 = vpop.f32.mrb[0].mxu0
    %v427 = vadd.f32 0.0, %v426
    %v428 = vpop.f32.mrb[0].mxu0
    %v429 = vpop.f32.mrb[0].mxu0
    %v430 = vadd.f32 0.0, %v429
    %v431 = vpop.f32.mrb[0].mxu0
    %432 = vmatprep.mubr.bf16.mxu0 0
    %433 = vmatmul.mubr.bf16.gmra.mrb[0].mxu0 %v279
    %v434 = vpop.f32.mrb[0].mxu0
    %v435 = vadd.f32 0.0, %v434
    %v436 = vpop.f32.mrb[0].mxu0
    %v437 = vpop.f32.mrb[0].mxu0
    %v438 = vadd.f32 0.0, %v437
    %v439 = vpop.f32.mrb[0].mxu0
    %440 = vmatprep.mubr.bf16.mxu0 0
    %441 = vmatmul.mubr.bf16.gmra.mrb[0].mxu0 %v282
    %v442 = vpop.f32.mrb[0].mxu0
    %v443 = vadd.f32 0.0, %v442
    %v444 = vpop.f32.mrb[0].mxu0
    %v445 = vpop.f32.mrb[0].mxu0
    %v446 = vadd.f32 0.0, %v445
    %v447 = vpop.f32.mrb[0].mxu0
    %448 = vdwg.mxu0
    %v449 = vld [vmem:[#allocation3] sm:$0x3]
    %v452 = vunpack.c.l.s4 1966171168
    %v453 = vunpack.c.0.s8 %v452
    %v454 = vlaneseq
    %v455 = vshrl.u32 %v454, 7
    %v456 = vsub.s32 %v453, %v455
    %v457 = vrot.slane %v449, %v456
    %v458 = vcombine.high %v457, %v457
    %v460 = vunpack.c.l.s4 1966171168
    %v461 = vunpack.c.0.s8 %v460
    %v462 = vlaneseq
    %v463 = vshrl.u32 %v462, 7
    %v464 = vsub.s32 %v461, %v463
    %v465 = vrot.slane %v457, %v464
    %v467 = vunpack.c.l.s4 1966171168
    %v468 = vunpack.c.0.s8 %v467
    %v469 = vlaneseq
    %v470 = vshrl.u32 %v469, 7
    %v471 = vsub.s32 %v468, %v470
    %v472 = vrot.slane %v458, %v471
    %v473 = vlaneseq
    %v474 = vshrl.u32 %v473, 7
    %v475 = vsub.s32 0, %v474
    %v476 = vrot.slane %v465, %v475
    %v477 = vlaneseq
    %v478 = vshrl.u32 %v477, 7
    %v479 = vsub.s32 0, %v478
    %v480 = vrot.slane %v472, %v479
    %v483 = vadd.f32 %v476, %v323
    %v484 = vadd.f32 %v476, %v326
    %v485 = vadd.f32 %v476, %v331
    %v486 = vadd.f32 %v476, %v334
    %v487 = vadd.f32 %v476, %v339
    %v488 = vadd.f32 %v476, %v342
    %v489 = vadd.f32 %v476, %v347
    %v490 = vadd.f32 %v476, %v350
    %v491 = vadd.f32 %v476, %v355
    %v492 = vadd.f32 %v476, %v358
    %v493 = vadd.f32 %v476, %v363
    %v494 = vadd.f32 %v476, %v366
    %v495 = vadd.f32 %v476, %v371
    %v496 = vadd.f32 %v476, %v374
    %v497 = vadd.f32 %v476, %v379
    %v498 = vadd.f32 %v476, %v382
    %v499 = vadd.f32 %v480, %v387
    %v500 = vadd.f32 %v480, %v390
    %v501 = vadd.f32 %v480, %v395
    %v502 = vadd.f32 %v480, %v398
    %v503 = vadd.f32 %v480, %v403
    %v504 = vadd.f32 %v480, %v406
    %v505 = vadd.f32 %v480, %v411
    %v506 = vadd.f32 %v480, %v414
    %v507 = vadd.f32 %v480, %v419
    %v508 = vadd.f32 %v480, %v422
    %v509 = vadd.f32 %v480, %v427
    %v510 = vadd.f32 %v480, %v430
    %v511 = vadd.f32 %v480, %v435
    %v512 = vadd.f32 %v480, %v438
    %v513 = vadd.f32 %v480, %v443
    %v514 = vadd.f32 %v480, %v446
    %v515 = vld [vmem:[#allocation6] sm:$0xf]
    %v516 = vld [vmem:[#allocation6 + $0x4] sm:$0xf]
    %v517 = vld [vmem:[#allocation6 + $0x8] sm:$0xf]
    %v518 = vld [vmem:[#allocation6 + $0xc] sm:$0xf]
    %v519 = vld [vmem:[#allocation6 + $0x10] sm:$0xf]
    %v520 = vld [vmem:[#allocation6 + $0x14] sm:$0xf]
    %v521 = vld [vmem:[#allocation6 + $0x18] sm:$0xf]
    %v522 = vld [vmem:[#allocation6 + $0x1c] sm:$0xf]
    %v523 = vld [vmem:[#allocation6 + $0x20] sm:$0xf]
    %v524 = vld [vmem:[#allocation6 + $0x24] sm:$0xf]
    %v525 = vld [vmem:[#allocation6 + $0x28] sm:$0xf]
    %v526 = vld [vmem:[#allocation6 + $0x2c] sm:$0xf]
    %v527 = vld [vmem:[#allocation6 + $0x30] sm:$0xf]
    %v528 = vld [vmem:[#allocation6 + $0x34] sm:$0xf]
    %v529 = vld [vmem:[#allocation6 + $0x38] sm:$0xf]
    %v530 = vld [vmem:[#allocation6 + $0x3c] sm:$0xf]
    %v531 = vld [vmem:[#allocation6 + $0x40] sm:$0xf]
    %v532 = vld [vmem:[#allocation6 + $0x44] sm:$0xf]
    %v533 = vld [vmem:[#allocation6 + $0x48] sm:$0xf]
    %v534 = vld [vmem:[#allocation6 + $0x4c] sm:$0xf]
    %v535 = vld [vmem:[#allocation6 + $0x50] sm:$0xf]
    %v536 = vld [vmem:[#allocation6 + $0x54] sm:$0xf]
    %v537 = vld [vmem:[#allocation6 + $0x58] sm:$0xf]
    %v538 = vld [vmem:[#allocation6 + $0x5c] sm:$0xf]
    %v539 = vld [vmem:[#allocation6 + $0x60] sm:$0xf]
    %v540 = vld [vmem:[#allocation6 + $0x64] sm:$0xf]
    %v541 = vld [vmem:[#allocation6 + $0x68] sm:$0xf]
    %v542 = vld [vmem:[#allocation6 + $0x6c] sm:$0xf]
    %v543 = vld [vmem:[#allocation6 + $0x70] sm:$0xf]
    %v544 = vld [vmem:[#allocation6 + $0x74] sm:$0xf]
    %v545 = vld [vmem:[#allocation6 + $0x78] sm:$0xf]
    %v546 = vld [vmem:[#allocation6 + $0x7c] sm:$0xf]
    %v547 = vunpack.c.l.bf16 %v515
    %v548 = vunpack.c.l.bf16 %v516
    %v549 = vunpack.c.l.bf16 %v517
    %v550 = vunpack.c.l.bf16 %v518
    %v551 = vunpack.c.l.bf16 %v519
    %v552 = vunpack.c.l.bf16 %v520
    %v553 = vunpack.c.l.bf16 %v521
    %v554 = vunpack.c.l.bf16 %v522
    %v555 = vunpack.c.l.bf16 %v523
    %v556 = vunpack.c.l.bf16 %v524
    %v557 = vunpack.c.l.bf16 %v525
    %v558 = vunpack.c.l.bf16 %v526
    %v559 = vunpack.c.l.bf16 %v527
    %v560 = vunpack.c.l.bf16 %v528
    %v561 = vunpack.c.l.bf16 %v529
    %v562 = vunpack.c.l.bf16 %v530
    %v563 = vunpack.c.l.bf16 %v531
    %v564 = vunpack.c.l.bf16 %v532
    %v565 = vunpack.c.l.bf16 %v533
    %v566 = vunpack.c.l.bf16 %v534
    %v567 = vunpack.c.l.bf16 %v535
    %v568 = vunpack.c.l.bf16 %v536
    %v569 = vunpack.c.l.bf16 %v537
    %v570 = vunpack.c.l.bf16 %v538
    %v571 = vunpack.c.l.bf16 %v539
    %v572 = vunpack.c.l.bf16 %v540
    %v573 = vunpack.c.l.bf16 %v541
    %v574 = vunpack.c.l.bf16 %v542
    %v575 = vunpack.c.l.bf16 %v543
    %v576 = vunpack.c.l.bf16 %v544
    %v577 = vunpack.c.l.bf16 %v545
    %v578 = vunpack.c.l.bf16 %v546
    %v579 = vadd.f32 %v483, %v547
    %v580 = vadd.f32 %v484, %v548
    %v581 = vadd.f32 %v485, %v549
    %v582 = vadd.f32 %v486, %v550
    %v583 = vadd.f32 %v487, %v551
    %v584 = vadd.f32 %v488, %v552
    %v585 = vadd.f32 %v489, %v553
    %v586 = vadd.f32 %v490, %v554
    %v587 = vadd.f32 %v491, %v555
    %v588 = vadd.f32 %v492, %v556
    %v589 = vadd.f32 %v493, %v557
    %v590 = vadd.f32 %v494, %v558
    %v591 = vadd.f32 %v495, %v559
    %v592 = vadd.f32 %v496, %v560
    %v593 = vadd.f32 %v497, %v561
    %v594 = vadd.f32 %v498, %v562
    %v595 = vadd.f32 %v499, %v563
    %v596 = vadd.f32 %v500, %v564
    %v597 = vadd.f32 %v501, %v565
    %v598 = vadd.f32 %v502, %v566
    %v599 = vadd.f32 %v503, %v567
    %v600 = vadd.f32 %v504, %v568
    %v601 = vadd.f32 %v505, %v569
    %v602 = vadd.f32 %v506, %v570
    %v603 = vadd.f32 %v507, %v571
    %v604 = vadd.f32 %v508, %v572
    %v605 = vadd.f32 %v509, %v573
    %v606 = vadd.f32 %v510, %v574
    %v607 = vadd.f32 %v511, %v575
    %v608 = vadd.f32 %v512, %v576
    %v609 = vadd.f32 %v513, %v577
    %v610 = vadd.f32 %v514, %v578
    %v611 = vtanh.pop %v579
    %v612 = vtanh.pop %v580
    %v613 = vtanh.pop %v581
    %v614 = vtanh.pop %v582
    %v615 = vtanh.pop %v583
    %v616 = vtanh.pop %v584
    %v617 = vtanh.pop %v585
    %v618 = vtanh.pop %v586
    %v619 = vtanh.pop %v587
    %v620 = vtanh.pop %v588
    %v621 = vtanh.pop %v589
    %v622 = vtanh.pop %v590
    %v623 = vtanh.pop %v591
    %v624 = vtanh.pop %v592
    %v625 = vtanh.pop %v593
    %v626 = vtanh.pop %v594
    %v627 = vtanh.pop %v595
    %v628 = vtanh.pop %v596
    %v629 = vtanh.pop %v597
    %v630 = vtanh.pop %v598
    %v631 = vtanh.pop %v599
    %v632 = vtanh.pop %v600
    %v633 = vtanh.pop %v601
    %v634 = vtanh.pop %v602
    %v635 = vtanh.pop %v603
    %v636 = vtanh.pop %v604
    %v637 = vtanh.pop %v605
    %v638 = vtanh.pop %v606
    %v639 = vtanh.pop %v607
    %v640 = vtanh.pop %v608
    %v641 = vtanh.pop %v609
    %v642 = vtanh.pop %v610
    %v643 = vld [vmem:[#allocation14] sm:$0x1]
    %v645 = vlaneseq
    %v646 = vshrl.u32 %v645, 7
    %v647 = vsub.s32 0, %v646
    %v648 = vrot.slane %v643, %v647
    %v650 = vmul.f32 %v611, %v648
    %v651 = vmul.f32 %v612, %v648
    %v652 = vmul.f32 %v613, %v648
    %v653 = vmul.f32 %v614, %v648
    %v654 = vmul.f32 %v615, %v648
    %v655 = vmul.f32 %v616, %v648
    %v656 = vmul.f32 %v617, %v648
    %v657 = vmul.f32 %v618, %v648
    %v658 = vmul.f32 %v619, %v648
    %v659 = vmul.f32 %v620, %v648
    %v660 = vmul.f32 %v621, %v648
    %v661 = vmul.f32 %v622, %v648
    %v662 = vmul.f32 %v623, %v648
    %v663 = vmul.f32 %v624, %v648
    %v664 = vmul.f32 %v625, %v648
    %v665 = vmul.f32 %v626, %v648
    %v666 = vmul.f32 %v627, %v648
    %v667 = vmul.f32 %v628, %v648
    %v668 = vmul.f32 %v629, %v648
    %v669 = vmul.f32 %v630, %v648
    %v670 = vmul.f32 %v631, %v648
    %v671 = vmul.f32 %v632, %v648
    %v672 = vmul.f32 %v633, %v648
    %v673 = vmul.f32 %v634, %v648
    %v674 = vmul.f32 %v635, %v648
    %v675 = vmul.f32 %v636, %v648
    %v676 = vmul.f32 %v637, %v648
    %v677 = vmul.f32 %v638, %v648
    %v678 = vmul.f32 %v639, %v648
    %v679 = vmul.f32 %v640, %v648
    %v680 = vmul.f32 %v641, %v648
    %v681 = vmul.f32 %v642, %v648
    %682 = vadd.xlane.f32.xlu0 %v650
    %v683 = vpop.xlane.xlu0 %682
    %684 = vadd.xlane.f32.xlu0 %v651
    %v685 = vpop.xlane.xlu0 %684
    %686 = vadd.xlane.f32.xlu0 %v652
    %v687 = vpop.xlane.xlu0 %686
    %688 = vadd.xlane.f32.xlu0 %v653
    %v689 = vpop.xlane.xlu0 %688
    %690 = vadd.xlane.f32.xlu0 %v654
    %v691 = vpop.xlane.xlu0 %690
    %692 = vadd.xlane.f32.xlu0 %v655
    %v693 = vpop.xlane.xlu0 %692
    %694 = vadd.xlane.f32.xlu0 %v656
    %v695 = vpop.xlane.xlu0 %694
    %696 = vadd.xlane.f32.xlu0 %v657
    %v697 = vpop.xlane.xlu0 %696
    %698 = vadd.xlane.f32.xlu0 %v658
    %v699 = vpop.xlane.xlu0 %698
    %700 = vadd.xlane.f32.xlu0 %v659
    %v701 = vpop.xlane.xlu0 %700
    %702 = vadd.xlane.f32.xlu0 %v660
    %v703 = vpop.xlane.xlu0 %702
    %704 = vadd.xlane.f32.xlu0 %v661
    %v705 = vpop.xlane.xlu0 %704
    %706 = vadd.xlane.f32.xlu0 %v662
    %v707 = vpop.xlane.xlu0 %706
    %708 = vadd.xlane.f32.xlu0 %v663
    %v709 = vpop.xlane.xlu0 %708
    %710 = vadd.xlane.f32.xlu0 %v664
    %v711 = vpop.xlane.xlu0 %710
    %712 = vadd.xlane.f32.xlu0 %v665
    %v713 = vpop.xlane.xlu0 %712
    %714 = vadd.xlane.f32.xlu0 %v666
    %v715 = vpop.xlane.xlu0 %714
    %716 = vadd.xlane.f32.xlu0 %v667
    %v717 = vpop.xlane.xlu0 %716
    %718 = vadd.xlane.f32.xlu0 %v668
    %v719 = vpop.xlane.xlu0 %718
    %720 = vadd.xlane.f32.xlu0 %v669
    %v721 = vpop.xlane.xlu0 %720
    %722 = vadd.xlane.f32.xlu0 %v670
    %v723 = vpop.xlane.xlu0 %722
    %724 = vadd.xlane.f32.xlu0 %v671
    %v725 = vpop.xlane.xlu0 %724
    %726 = vadd.xlane.f32.xlu0 %v672
    %v727 = vpop.xlane.xlu0 %726
    %728 = vadd.xlane.f32.xlu0 %v673
    %v729 = vpop.xlane.xlu0 %728
    %730 = vadd.xlane.f32.xlu0 %v674
    %v731 = vpop.xlane.xlu0 %730
    %732 = vadd.xlane.f32.xlu0 %v675
    %v733 = vpop.xlane.xlu0 %732
    %734 = vadd.xlane.f32.xlu0 %v676
    %v735 = vpop.xlane.xlu0 %734
    %736 = vadd.xlane.f32.xlu0 %v677
    %v737 = vpop.xlane.xlu0 %736
    %738 = vadd.xlane.f32.xlu0 %v678
    %v739 = vpop.xlane.xlu0 %738
    %740 = vadd.xlane.f32.xlu0 %v679
    %v741 = vpop.xlane.xlu0 %740
    %742 = vadd.xlane.f32.xlu0 %v680
    %v743 = vpop.xlane.xlu0 %742
    %744 = vadd.xlane.f32.xlu0 %v681
    %v745 = vpop.xlane.xlu0 %744
    %s746 = sld [smem:[#allocation2]]
    %v747 = vstv %s746
    %v748 = vadd.f32 %v683, %v747
    %v749 = vadd.f32 %v685, %v747
    %v750 = vadd.f32 %v687, %v747
    %v751 = vadd.f32 %v689, %v747
    %v752 = vadd.f32 %v691, %v747
    %v753 = vadd.f32 %v693, %v747
    %v754 = vadd.f32 %v695, %v747
    %v755 = vadd.f32 %v697, %v747
    %v756 = vadd.f32 %v699, %v747
    %v757 = vadd.f32 %v701, %v747
    %v758 = vadd.f32 %v703, %v747
    %v759 = vadd.f32 %v705, %v747
    %v760 = vadd.f32 %v707, %v747
    %v761 = vadd.f32 %v709, %v747
    %v762 = vadd.f32 %v711, %v747
    %v763 = vadd.f32 %v713, %v747
    %v764 = vadd.f32 %v715, %v747
    %v765 = vadd.f32 %v717, %v747
    %v766 = vadd.f32 %v719, %v747
    %v767 = vadd.f32 %v721, %v747
    %v768 = vadd.f32 %v723, %v747
    %v769 = vadd.f32 %v725, %v747
    %v770 = vadd.f32 %v727, %v747
    %v771 = vadd.f32 %v729, %v747
    %v772 = vadd.f32 %v731, %v747
    %v773 = vadd.f32 %v733, %v747
    %v774 = vadd.f32 %v735, %v747
    %v775 = vadd.f32 %v737, %v747
    %v776 = vadd.f32 %v739, %v747
    %v777 = vadd.f32 %v741, %v747
    %v778 = vadd.f32 %v743, %v747
    %v779 = vadd.f32 %v745, %v747
    %v780 = vld [vmem:[#allocation9] sm:$0x1]
    %v781 = vunpack.c.l.bf16 %v780
    %v784 = vunpack.c.l.s4 1983009808
    %v785 = vunpack.c.0.s8 %v784
    %v786 = vlaneseq
    %v787 = vshrl.u32 %v786, 7
    %v788 = vsub.s32 %v785, %v787
    %v789 = vrot.slane %v781, %v788
    %v790 = vlaneseq
    %v791 = vshrl.u32 %v790, 7
    %v792 = vsub.s32 0, %v791
    %v793 = vrot.slane %v789, %v792
    %795 = vbcast.lane.b32.xlu0 %v793, 256
    %v796 = vpop.permute.xlu0 %795
    %s798 = sor.u32 256, 8
    %799 = vbcast.lane.b32.xlu0 %v793, %s798
    %v800 = vpop.permute.xlu0 %799
    %s802 = sor.u32 256, 16
    %803 = vbcast.lane.b32.xlu0 %v793, %s802
    %v804 = vpop.permute.xlu0 %803
    %s806 = sor.u32 256, 24
    %807 = vbcast.lane.b32.xlu0 %v793, %s806
    %v808 = vpop.permute.xlu0 %807
    %s810 = sor.u32 256, 32
    %811 = vbcast.lane.b32.xlu0 %v793, %s810
    %v812 = vpop.permute.xlu0 %811
    %s814 = sor.u32 256, 40
    %815 = vbcast.lane.b32.xlu0 %v793, %s814
    %v816 = vpop.permute.xlu0 %815
    %s818 = sor.u32 256, 48
    %819 = vbcast.lane.b32.xlu0 %v793, %s818
    %v820 = vpop.permute.xlu0 %819
    %s822 = sor.u32 256, 56
    %823 = vbcast.lane.b32.xlu0 %v793, %s822
    %v824 = vpop.permute.xlu0 %823
    %s826 = sor.u32 256, 64
    %827 = vbcast.lane.b32.xlu0 %v793, %s826
    %v828 = vpop.permute.xlu0 %827
    %s830 = sor.u32 256, 72
    %831 = vbcast.lane.b32.xlu0 %v793, %s830
    %v832 = vpop.permute.xlu0 %831
    %s834 = sor.u32 256, 80
    %835 = vbcast.lane.b32.xlu0 %v793, %s834
    %v836 = vpop.permute.xlu0 %835
    %s838 = sor.u32 256, 88
    %839 = vbcast.lane.b32.xlu0 %v793, %s838
    %v840 = vpop.permute.xlu0 %839
    %s842 = sor.u32 256, 96
    %843 = vbcast.lane.b32.xlu0 %v793, %s842
    %v844 = vpop.permute.xlu0 %843
    %s846 = sor.u32 256, 104
    %847 = vbcast.lane.b32.xlu0 %v793, %s846
    %v848 = vpop.permute.xlu0 %847
    %s850 = sor.u32 256, 112
    %851 = vbcast.lane.b32.xlu0 %v793, %s850
    %v852 = vpop.permute.xlu0 %851
    %s854 = sor.u32 256, 120
    %855 = vbcast.lane.b32.xlu0 %v793, %s854
    %v856 = vpop.permute.xlu0 %855
    %v857 = vlaneseq
    %v858 = vshrl.u32 %v857, 7
    %v859 = vsub.s32 1, %v858
    %v860 = vrot.slane %v789, %v859
    %862 = vbcast.lane.b32.xlu0 %v860, 256
    %v863 = vpop.permute.xlu0 %862
    %s865 = sor.u32 256, 8
    %866 = vbcast.lane.b32.xlu0 %v860, %s865
    %v867 = vpop.permute.xlu0 %866
    %s869 = sor.u32 256, 16
    %870 = vbcast.lane.b32.xlu0 %v860, %s869
    %v871 = vpop.permute.xlu0 %870
    %s873 = sor.u32 256, 24
    %874 = vbcast.lane.b32.xlu0 %v860, %s873
    %v875 = vpop.permute.xlu0 %874
    %s877 = sor.u32 256, 32
    %878 = vbcast.lane.b32.xlu0 %v860, %s877
    %v879 = vpop.permute.xlu0 %878
    %s881 = sor.u32 256, 40
    %882 = vbcast.lane.b32.xlu0 %v860, %s881
    %v883 = vpop.permute.xlu0 %882
    %s885 = sor.u32 256, 48
    %886 = vbcast.lane.b32.xlu0 %v860, %s885
    %v887 = vpop.permute.xlu0 %886
    %s889 = sor.u32 256, 56
    %890 = vbcast.lane.b32.xlu0 %v860, %s889
    %v891 = vpop.permute.xlu0 %890
    %s893 = sor.u32 256, 64
    %894 = vbcast.lane.b32.xlu0 %v860, %s893
    %v895 = vpop.permute.xlu0 %894
    %s897 = sor.u32 256, 72
    %898 = vbcast.lane.b32.xlu0 %v860, %s897
    %v899 = vpop.permute.xlu0 %898
    %s901 = sor.u32 256, 80
    %902 = vbcast.lane.b32.xlu0 %v860, %s901
    %v903 = vpop.permute.xlu0 %902
    %s905 = sor.u32 256, 88
    %906 = vbcast.lane.b32.xlu0 %v860, %s905
    %v907 = vpop.permute.xlu0 %906
    %s909 = sor.u32 256, 96
    %910 = vbcast.lane.b32.xlu0 %v860, %s909
    %v911 = vpop.permute.xlu0 %910
    %s913 = sor.u32 256, 104
    %914 = vbcast.lane.b32.xlu0 %v860, %s913
    %v915 = vpop.permute.xlu0 %914
    %s917 = sor.u32 256, 112
    %918 = vbcast.lane.b32.xlu0 %v860, %s917
    %v919 = vpop.permute.xlu0 %918
    %s921 = sor.u32 256, 120
    %922 = vbcast.lane.b32.xlu0 %v860, %s921
    %v923 = vpop.permute.xlu0 %922
    %v956 = vadd.f32 %v748, %v796
    %v957 = vadd.f32 %v749, %v800
    %v958 = vadd.f32 %v750, %v804
    %v959 = vadd.f32 %v751, %v808
    %v960 = vadd.f32 %v752, %v812
    %v961 = vadd.f32 %v753, %v816
    %v962 = vadd.f32 %v754, %v820
    %v963 = vadd.f32 %v755, %v824
    %v964 = vadd.f32 %v756, %v828
    %v965 = vadd.f32 %v757, %v832
    %v966 = vadd.f32 %v758, %v836
    %v967 = vadd.f32 %v759, %v840
    %v968 = vadd.f32 %v760, %v844
    %v969 = vadd.f32 %v761, %v848
    %v970 = vadd.f32 %v762, %v852
    %v971 = vadd.f32 %v763, %v856
    %v972 = vadd.f32 %v764, %v863
    %v973 = vadd.f32 %v765, %v867
    %v974 = vadd.f32 %v766, %v871
    %v975 = vadd.f32 %v767, %v875
    %v976 = vadd.f32 %v768, %v879
    %v977 = vadd.f32 %v769, %v883
    %v978 = vadd.f32 %v770, %v887
    %v979 = vadd.f32 %v771, %v891
    %v980 = vadd.f32 %v772, %v895
    %v981 = vadd.f32 %v773, %v899
    %v982 = vadd.f32 %v774, %v903
    %v983 = vadd.f32 %v775, %v907
    %v984 = vadd.f32 %v776, %v911
    %v985 = vadd.f32 %v777, %v915
    %v986 = vadd.f32 %v778, %v919
    %v987 = vadd.f32 %v779, %v923
    %1020 = vset.pattern.permute.xlu0 0
    %1021 = vperm.xlu0 %1020, %v956
    %v1022 = vpop.permute.xlu0 %1021
    %1023 = vset.pattern.permute.xlu0 0
    %1024 = vperm.xlu0 %1023, %v957
    %v1025 = vpop.permute.xlu0 %1024
    %1026 = vset.pattern.permute.xlu0 0
    %1027 = vperm.xlu0 %1026, %v958
    %v1028 = vpop.permute.xlu0 %1027
    %1029 = vset.pattern.permute.xlu0 0
    %1030 = vperm.xlu0 %1029, %v959
    %v1031 = vpop.permute.xlu0 %1030
    %1032 = vset.pattern.permute.xlu0 0
    %1033 = vperm.xlu0 %1032, %v960
    %v1034 = vpop.permute.xlu0 %1033
    %1035 = vset.pattern.permute.xlu0 0
    %1036 = vperm.xlu0 %1035, %v961
    %v1037 = vpop.permute.xlu0 %1036
    %1038 = vset.pattern.permute.xlu0 0
    %1039 = vperm.xlu0 %1038, %v962
    %v1040 = vpop.permute.xlu0 %1039
    %1041 = vset.pattern.permute.xlu0 0
    %1042 = vperm.xlu0 %1041, %v963
    %v1043 = vpop.permute.xlu0 %1042
    %1044 = vset.pattern.permute.xlu0 0
    %1045 = vperm.xlu0 %1044, %v964
    %v1046 = vpop.permute.xlu0 %1045
    %1047 = vset.pattern.permute.xlu0 0
    %1048 = vperm.xlu0 %1047, %v965
    %v1049 = vpop.permute.xlu0 %1048
    %1050 = vset.pattern.permute.xlu0 0
    %1051 = vperm.xlu0 %1050, %v966
    %v1052 = vpop.permute.xlu0 %1051
    %1053 = vset.pattern.permute.xlu0 0
    %1054 = vperm.xlu0 %1053, %v967
    %v1055 = vpop.permute.xlu0 %1054
    %1056 = vset.pattern.permute.xlu0 0
    %1057 = vperm.xlu0 %1056, %v968
    %v1058 = vpop.permute.xlu0 %1057
    %1059 = vset.pattern.permute.xlu0 0
    %1060 = vperm.xlu0 %1059, %v969
    %v1061 = vpop.permute.xlu0 %1060
    %1062 = vset.pattern.permute.xlu0 0
    %1063 = vperm.xlu0 %1062, %v970
    %v1064 = vpop.permute.xlu0 %1063
    %1065 = vset.pattern.permute.xlu0 0
    %1066 = vperm.xlu0 %1065, %v971
    %v1067 = vpop.permute.xlu0 %1066
    %1068 = vset.pattern.permute.xlu0 0
    %1069 = vperm.xlu0 %1068, %v972
    %v1070 = vpop.permute.xlu0 %1069
    %1071 = vset.pattern.permute.xlu0 0
    %1072 = vperm.xlu0 %1071, %v973
    %v1073 = vpop.permute.xlu0 %1072
    %1074 = vset.pattern.permute.xlu0 0
    %1075 = vperm.xlu0 %1074, %v974
    %v1076 = vpop.permute.xlu0 %1075
    %1077 = vset.pattern.permute.xlu0 0
    %1078 = vperm.xlu0 %1077, %v975
    %v1079 = vpop.permute.xlu0 %1078
    %1080 = vset.pattern.permute.xlu0 0
    %1081 = vperm.xlu0 %1080, %v976
    %v1082 = vpop.permute.xlu0 %1081
    %1083 = vset.pattern.permute.xlu0 0
    %1084 = vperm.xlu0 %1083, %v977
    %v1085 = vpop.permute.xlu0 %1084
    %1086 = vset.pattern.permute.xlu0 0
    %1087 = vperm.xlu0 %1086, %v978
    %v1088 = vpop.permute.xlu0 %1087
    %1089 = vset.pattern.permute.xlu0 0
    %1090 = vperm.xlu0 %1089, %v979
    %v1091 = vpop.permute.xlu0 %1090
    %1092 = vset.pattern.permute.xlu0 0
    %1093 = vperm.xlu0 %1092, %v980
    %v1094 = vpop.permute.xlu0 %1093
    %1095 = vset.pattern.permute.xlu0 0
    %1096 = vperm.xlu0 %1095, %v981
    %v1097 = vpop.permute.xlu0 %1096
    %1098 = vset.pattern.permute.xlu0 0
    %1099 = vperm.xlu0 %1098, %v982
    %v1100 = vpop.permute.xlu0 %1099
    %1101 = vset.pattern.permute.xlu0 0
    %1102 = vperm.xlu0 %1101, %v983
    %v1103 = vpop.permute.xlu0 %1102
    %1104 = vset.pattern.permute.xlu0 0
    %1105 = vperm.xlu0 %1104, %v984
    %v1106 = vpop.permute.xlu0 %1105
    %1107 = vset.pattern.permute.xlu0 0
    %1108 = vperm.xlu0 %1107, %v985
    %v1109 = vpop.permute.xlu0 %1108
    %1110 = vset.pattern.permute.xlu0 0
    %1111 = vperm.xlu0 %1110, %v986
    %v1112 = vpop.permute.xlu0 %1111
    %1113 = vset.pattern.permute.xlu0 0
    %1114 = vperm.xlu0 %1113, %v987
    %v1115 = vpop.permute.xlu0 %1114
    %v1116 = vlaneseq
    %v1117 = vand.u32 %v1116, 127
    %v1118 = vlaneseq
    %v1119 = vshrl.u32 %v1118, 7
    %v1120 = vsub.s32 %v1117, %v1119
    %v1121 = vrot.slane %v1022, %v1120
    %v1122 = vadd.s32 %v1117, 4294967288
    %v1123 = vlaneseq
    %v1124 = vshrl.u32 %v1123, 7
    %v1125 = vsub.s32 %v1122, %v1124
    %v1126 = vrot.slane %v1025, %v1125
    %vm1127 = vcmask 130112
    %v1128 = vsel %vm1127, %v1126, %v1121
    %v1129 = vadd.s32 %v1117, 4294967280
    %v1130 = vlaneseq
    %v1131 = vshrl.u32 %v1130, 7
    %v1132 = vsub.s32 %v1129, %v1131
    %v1133 = vrot.slane %v1028, %v1132
    %vm1134 = vcmask 195712
    %v1135 = vsel %vm1134, %v1133, %v1128
    %v1136 = vadd.s32 %v1117, 4294967272
    %v1137 = vlaneseq
    %v1138 = vshrl.u32 %v1137, 7
    %v1139 = vsub.s32 %v1136, %v1138
    %v1140 = vrot.slane %v1031, %v1139
    %vm1141 = vcmask 261312
    %v1142 = vsel %vm1141, %v1140, %v1135
    %v1143 = vadd.s32 %v1117, 4294967264
    %v1144 = vlaneseq
    %v1145 = vshrl.u32 %v1144, 7
    %v1146 = vsub.s32 %v1143, %v1145
    %v1147 = vrot.slane %v1034, %v1146
    %vm1148 = vcmask 326912
    %v1149 = vsel %vm1148, %v1147, %v1142
    %v1150 = vadd.s32 %v1117, 4294967256
    %v1151 = vlaneseq
    %v1152 = vshrl.u32 %v1151, 7
    %v1153 = vsub.s32 %v1150, %v1152
    %v1154 = vrot.slane %v1037, %v1153
    %vm1155 = vcmask 392512
    %v1156 = vsel %vm1155, %v1154, %v1149
    %v1157 = vadd.s32 %v1117, 4294967248
    %v1158 = vlaneseq
    %v1159 = vshrl.u32 %v1158, 7
    %v1160 = vsub.s32 %v1157, %v1159
    %v1161 = vrot.slane %v1040, %v1160
    %vm1162 = vcmask 458112
    %v1163 = vsel %vm1162, %v1161, %v1156
    %v1164 = vadd.s32 %v1117, 4294967240
    %v1165 = vlaneseq
    %v1166 = vshrl.u32 %v1165, 7
    %v1167 = vsub.s32 %v1164, %v1166
    %v1168 = vrot.slane %v1043, %v1167
    %vm1169 = vcmask 523712
    %v1170 = vsel %vm1169, %v1168, %v1163
    %v1171 = vadd.s32 %v1117, 4294967232
    %v1172 = vlaneseq
    %v1173 = vshrl.u32 %v1172, 7
    %v1174 = vsub.s32 %v1171, %v1173
    %v1175 = vrot.slane %v1046, %v1174
    %vm1176 = vcmask 589312
    %v1177 = vsel %vm1176, %v1175, %v1170
    %v1178 = vadd.s32 %v1117, 4294967224
    %v1179 = vlaneseq
    %v1180 = vshrl.u32 %v1179, 7
    %v1181 = vsub.s32 %v1178, %v1180
    %v1182 = vrot.slane %v1049, %v1181
    %vm1183 = vcmask 654912
    %v1184 = vsel %vm1183, %v1182, %v1177
    %v1185 = vadd.s32 %v1117, 4294967216
    %v1186 = vlaneseq
    %v1187 = vshrl.u32 %v1186, 7
    %v1188 = vsub.s32 %v1185, %v1187
    %v1189 = vrot.slane %v1052, %v1188
    %vm1190 = vcmask 720512
    %v1191 = vsel %vm1190, %v1189, %v1184
    %v1192 = vadd.s32 %v1117, 4294967208
    %v1193 = vlaneseq
    %v1194 = vshrl.u32 %v1193, 7
    %v1195 = vsub.s32 %v1192, %v1194
    %v1196 = vrot.slane %v1055, %v1195
    %vm1197 = vcmask 786112
    %v1198 = vsel %vm1197, %v1196, %v1191
    %v1199 = vadd.s32 %v1117, 4294967200
    %v1200 = vlaneseq
    %v1201 = vshrl.u32 %v1200, 7
    %v1202 = vsub.s32 %v1199, %v1201
    %v1203 = vrot.slane %v1058, %v1202
    %vm1204 = vcmask 851712
    %v1205 = vsel %vm1204, %v1203, %v1198
    %v1206 = vadd.s32 %v1117, 4294967192
    %v1207 = vlaneseq
    %v1208 = vshrl.u32 %v1207, 7
    %v1209 = vsub.s32 %v1206, %v1208
    %v1210 = vrot.slane %v1061, %v1209
    %vm1211 = vcmask 917312
    %v1212 = vsel %vm1211, %v1210, %v1205
    %v1213 = vadd.s32 %v1117, 4294967184
    %v1214 = vlaneseq
    %v1215 = vshrl.u32 %v1214, 7
    %v1216 = vsub.s32 %v1213, %v1215
    %v1217 = vrot.slane %v1064, %v1216
    %vm1218 = vcmask 982912
    %v1219 = vsel %vm1218, %v1217, %v1212
    %v1220 = vadd.s32 %v1117, 4294967176
    %v1221 = vlaneseq
    %v1222 = vshrl.u32 %v1221, 7
    %v1223 = vsub.s32 %v1220, %v1222
    %v1224 = vrot.slane %v1067, %v1223
    %vm1225 = vcmask 1048512
    %v1226 = vsel %vm1225, %v1224, %v1219
    %v1227 = vlaneseq
    %v1228 = vshrl.u32 %v1227, 7
    %v1229 = vsub.s32 %v1117, %v1228
    %v1230 = vrot.slane %v1070, %v1229
    %v1231 = vlaneseq
    %v1232 = vshrl.u32 %v1231, 7
    %v1233 = vsub.s32 %v1122, %v1232
    %v1234 = vrot.slane %v1073, %v1233
    %v1235 = vsel %vm1127, %v1234, %v1230
    %v1236 = vlaneseq
    %v1237 = vshrl.u32 %v1236, 7
    %v1238 = vsub.s32 %v1129, %v1237
    %v1239 = vrot.slane %v1076, %v1238
    %v1240 = vsel %vm1134, %v1239, %v1235
    %v1241 = vlaneseq
    %v1242 = vshrl.u32 %v1241, 7
    %v1243 = vsub.s32 %v1136, %v1242
    %v1244 = vrot.slane %v1079, %v1243
    %v1245 = vsel %vm1141, %v1244, %v1240
    %v1246 = vlaneseq
    %v1247 = vshrl.u32 %v1246, 7
    %v1248 = vsub.s32 %v1143, %v1247
    %v1249 = vrot.slane %v1082, %v1248
    %v1250 = vsel %vm1148, %v1249, %v1245
    %v1251 = vlaneseq
    %v1252 = vshrl.u32 %v1251, 7
    %v1253 = vsub.s32 %v1150, %v1252
    %v1254 = vrot.slane %v1085, %v1253
    %v1255 = vsel %vm1155, %v1254, %v1250
    %v1256 = vlaneseq
    %v1257 = vshrl.u32 %v1256, 7
    %v1258 = vsub.s32 %v1157, %v1257
    %v1259 = vrot.slane %v1088, %v1258
    %v1260 = vsel %vm1162, %v1259, %v1255
    %v1261 = vlaneseq
    %v1262 = vshrl.u32 %v1261, 7
    %v1263 = vsub.s32 %v1164, %v1262
    %v1264 = vrot.slane %v1091, %v1263
    %v1265 = vsel %vm1169, %v1264, %v1260
    %v1266 = vlaneseq
    %v1267 = vshrl.u32 %v1266, 7
    %v1268 = vsub.s32 %v1171, %v1267
    %v1269 = vrot.slane %v1094, %v1268
    %v1270 = vsel %vm1176, %v1269, %v1265
    %v1271 = vlaneseq
    %v1272 = vshrl.u32 %v1271, 7
    %v1273 = vsub.s32 %v1178, %v1272
    %v1274 = vrot.slane %v1097, %v1273
    %v1275 = vsel %vm1183, %v1274, %v1270
    %v1276 = vlaneseq
    %v1277 = vshrl.u32 %v1276, 7
    %v1278 = vsub.s32 %v1185, %v1277
    %v1279 = vrot.slane %v1100, %v1278
    %v1280 = vsel %vm1190, %v1279, %v1275
    %v1281 = vlaneseq
    %v1282 = vshrl.u32 %v1281, 7
    %v1283 = vsub.s32 %v1192, %v1282
    %v1284 = vrot.slane %v1103, %v1283
    %v1285 = vsel %vm1197, %v1284, %v1280
    %v1286 = vlaneseq
    %v1287 = vshrl.u32 %v1286, 7
    %v1288 = vsub.s32 %v1199, %v1287
    %v1289 = vrot.slane %v1106, %v1288
    %v1290 = vsel %vm1204, %v1289, %v1285
    %v1291 = vlaneseq
    %v1292 = vshrl.u32 %v1291, 7
    %v1293 = vsub.s32 %v1206, %v1292
    %v1294 = vrot.slane %v1109, %v1293
    %v1295 = vsel %vm1211, %v1294, %v1290
    %v1296 = vlaneseq
    %v1297 = vshrl.u32 %v1296, 7
    %v1298 = vsub.s32 %v1213, %v1297
    %v1299 = vrot.slane %v1112, %v1298
    %v1300 = vsel %vm1218, %v1299, %v1295
    %v1301 = vlaneseq
    %v1302 = vshrl.u32 %v1301, 7
    %v1303 = vsub.s32 %v1220, %v1302
    %v1304 = vrot.slane %v1115, %v1303
    %v1305 = vsel %vm1225, %v1304, %v1300
    %vm1306 = vcmask 1041409
    %v1307 = vsel %vm1306, %v1305, %v1226
    %vm1309 = vcmask 1041408
    %v1310 = vsel %vm1309, %v1307, -inf
    %1311 = vmax.xlane.f32.xlu0 %v1310
    %v1312 = vpop.xlane.xlu0 %1311
    %v1314 = vlaneseq
    %v1315 = vshrl.u32 %v1314, 7
    %v1316 = vsub.s32 0, %v1315
    %v1317 = vrot.slane %v1312, %v1316
    %v1318 = vlaneseq
    %v1319 = vshrl.u32 %v1318, 7
    %v1320 = vsub.s32 1, %v1319
    %v1321 = vrot.slane %v1312, %v1320
    %v1324 = vsub.f32 %v956, %v1317
    %v1325 = vsub.f32 %v957, %v1317
    %v1326 = vsub.f32 %v958, %v1317
    %v1327 = vsub.f32 %v959, %v1317
    %v1328 = vsub.f32 %v960, %v1317
    %v1329 = vsub.f32 %v961, %v1317
    %v1330 = vsub.f32 %v962, %v1317
    %v1331 = vsub.f32 %v963, %v1317
    %v1332 = vsub.f32 %v964, %v1317
    %v1333 = vsub.f32 %v965, %v1317
    %v1334 = vsub.f32 %v966, %v1317
    %v1335 = vsub.f32 %v967, %v1317
    %v1336 = vsub.f32 %v968, %v1317
    %v1337 = vsub.f32 %v969, %v1317
    %v1338 = vsub.f32 %v970, %v1317
    %v1339 = vsub.f32 %v971, %v1317
    %v1340 = vsub.f32 %v972, %v1321
    %v1341 = vsub.f32 %v973, %v1321
    %v1342 = vsub.f32 %v974, %v1321
    %v1343 = vsub.f32 %v975, %v1321
    %v1344 = vsub.f32 %v976, %v1321
    %v1345 = vsub.f32 %v977, %v1321
    %v1346 = vsub.f32 %v978, %v1321
    %v1347 = vsub.f32 %v979, %v1321
    %v1348 = vsub.f32 %v980, %v1321
    %v1349 = vsub.f32 %v981, %v1321
    %v1350 = vsub.f32 %v982, %v1321
    %v1351 = vsub.f32 %v983, %v1321
    %v1352 = vsub.f32 %v984, %v1321
    %v1353 = vsub.f32 %v985, %v1321
    %v1354 = vsub.f32 %v986, %v1321
    %v1355 = vsub.f32 %v987, %v1321
    %v1356 = vmul.f32 %v1324, 1.442695
    %v1357 = vpow.pop %v1356
    %v1358 = vmul.f32 %v1325, 1.442695
    %v1359 = vpow.pop %v1358
    %v1360 = vmul.f32 %v1326, 1.442695
    %v1361 = vpow.pop %v1360
    %v1362 = vmul.f32 %v1327, 1.442695
    %v1363 = vpow.pop %v1362
    %v1364 = vmul.f32 %v1328, 1.442695
    %v1365 = vpow.pop %v1364
    %v1366 = vmul.f32 %v1329, 1.442695
    %v1367 = vpow.pop %v1366
    %v1368 = vmul.f32 %v1330, 1.442695
    %v1369 = vpow.pop %v1368
    %v1370 = vmul.f32 %v1331, 1.442695
    %v1371 = vpow.pop %v1370
    %v1372 = vmul.f32 %v1332, 1.442695
    %v1373 = vpow.pop %v1372
    %v1374 = vmul.f32 %v1333, 1.442695
    %v1375 = vpow.pop %v1374
    %v1376 = vmul.f32 %v1334, 1.442695
    %v1377 = vpow.pop %v1376
    %v1378 = vmul.f32 %v1335, 1.442695
    %v1379 = vpow.pop %v1378
    %v1380 = vmul.f32 %v1336, 1.442695
    %v1381 = vpow.pop %v1380
    %v1382 = vmul.f32 %v1337, 1.442695
    %v1383 = vpow.pop %v1382
    %v1384 = vmul.f32 %v1338, 1.442695
    %v1385 = vpow.pop %v1384
    %v1386 = vmul.f32 %v1339, 1.442695
    %v1387 = vpow.pop %v1386
    %v1388 = vmul.f32 %v1340, 1.442695
    %v1389 = vpow.pop %v1388
    %v1390 = vmul.f32 %v1341, 1.442695
    %v1391 = vpow.pop %v1390
    %v1392 = vmul.f32 %v1342, 1.442695
    %v1393 = vpow.pop %v1392
    %v1394 = vmul.f32 %v1343, 1.442695
    %v1395 = vpow.pop %v1394
    %v1396 = vmul.f32 %v1344, 1.442695
    %v1397 = vpow.pop %v1396
    %v1398 = vmul.f32 %v1345, 1.442695
    %v1399 = vpow.pop %v1398
    %v1400 = vmul.f32 %v1346, 1.442695
    %v1401 = vpow.pop %v1400
    %v1402 = vmul.f32 %v1347, 1.442695
    %v1403 = vpow.pop %v1402
    %v1404 = vmul.f32 %v1348, 1.442695
    %v1405 = vpow.pop %v1404
    %v1406 = vmul.f32 %v1349, 1.442695
    %v1407 = vpow.pop %v1406
    %v1408 = vmul.f32 %v1350, 1.442695
    %v1409 = vpow.pop %v1408
    %v1410 = vmul.f32 %v1351, 1.442695
    %v1411 = vpow.pop %v1410
    %v1412 = vmul.f32 %v1352, 1.442695
    %v1413 = vpow.pop %v1412
    %v1414 = vmul.f32 %v1353, 1.442695
    %v1415 = vpow.pop %v1414
    %v1416 = vmul.f32 %v1354, 1.442695
    %v1417 = vpow.pop %v1416
    %v1418 = vmul.f32 %v1355, 1.442695
    %v1419 = vpow.pop %v1418
    %1452 = vset.pattern.permute.xlu0 0
    %1453 = vperm.xlu0 %1452, %v1357
    %v1454 = vpop.permute.xlu0 %1453
    %1455 = vset.pattern.permute.xlu0 0
    %1456 = vperm.xlu0 %1455, %v1359
    %v1457 = vpop.permute.xlu0 %1456
    %1458 = vset.pattern.permute.xlu0 0
    %1459 = vperm.xlu0 %1458, %v1361
    %v1460 = vpop.permute.xlu0 %1459
    %1461 = vset.pattern.permute.xlu0 0
    %1462 = vperm.xlu0 %1461, %v1363
    %v1463 = vpop.permute.xlu0 %1462
    %1464 = vset.pattern.permute.xlu0 0
    %1465 = vperm.xlu0 %1464, %v1365
    %v1466 = vpop.permute.xlu0 %1465
    %1467 = vset.pattern.permute.xlu0 0
    %1468 = vperm.xlu0 %1467, %v1367
    %v1469 = vpop.permute.xlu0 %1468
    %1470 = vset.pattern.permute.xlu0 0
    %1471 = vperm.xlu0 %1470, %v1369
    %v1472 = vpop.permute.xlu0 %1471
    %1473 = vset.pattern.permute.xlu0 0
    %1474 = vperm.xlu0 %1473, %v1371
    %v1475 = vpop.permute.xlu0 %1474
    %1476 = vset.pattern.permute.xlu0 0
    %1477 = vperm.xlu0 %1476, %v1373
    %v1478 = vpop.permute.xlu0 %1477
    %1479 = vset.pattern.permute.xlu0 0
    %1480 = vperm.xlu0 %1479, %v1375
    %v1481 = vpop.permute.xlu0 %1480
    %1482 = vset.pattern.permute.xlu0 0
    %1483 = vperm.xlu0 %1482, %v1377
    %v1484 = vpop.permute.xlu0 %1483
    %1485 = vset.pattern.permute.xlu0 0
    %1486 = vperm.xlu0 %1485, %v1379
    %v1487 = vpop.permute.xlu0 %1486
    %1488 = vset.pattern.permute.xlu0 0
    %1489 = vperm.xlu0 %1488, %v1381
    %v1490 = vpop.permute.xlu0 %1489
    %1491 = vset.pattern.permute.xlu0 0
    %1492 = vperm.xlu0 %1491, %v1383
    %v1493 = vpop.permute.xlu0 %1492
    %1494 = vset.pattern.permute.xlu0 0
    %1495 = vperm.xlu0 %1494, %v1385
    %v1496 = vpop.permute.xlu0 %1495
    %1497 = vset.pattern.permute.xlu0 0
    %1498 = vperm.xlu0 %1497, %v1387
    %v1499 = vpop.permute.xlu0 %1498
    %1500 = vset.pattern.permute.xlu0 0
    %1501 = vperm.xlu0 %1500, %v1389
    %v1502 = vpop.permute.xlu0 %1501
    %1503 = vset.pattern.permute.xlu0 0
    %1504 = vperm.xlu0 %1503, %v1391
    %v1505 = vpop.permute.xlu0 %1504
    %1506 = vset.pattern.permute.xlu0 0
    %1507 = vperm.xlu0 %1506, %v1393
    %v1508 = vpop.permute.xlu0 %1507
    %1509 = vset.pattern.permute.xlu0 0
    %1510 = vperm.xlu0 %1509, %v1395
    %v1511 = vpop.permute.xlu0 %1510
    %1512 = vset.pattern.permute.xlu0 0
    %1513 = vperm.xlu0 %1512, %v1397
    %v1514 = vpop.permute.xlu0 %1513
    %1515 = vset.pattern.permute.xlu0 0
    %1516 = vperm.xlu0 %1515, %v1399
    %v1517 = vpop.permute.xlu0 %1516
    %1518 = vset.pattern.permute.xlu0 0
    %1519 = vperm.xlu0 %1518, %v1401
    %v1520 = vpop.permute.xlu0 %1519
    %1521 = vset.pattern.permute.xlu0 0
    %1522 = vperm.xlu0 %1521, %v1403
    %v1523 = vpop.permute.xlu0 %1522
    %1524 = vset.pattern.permute.xlu0 0
    %1525 = vperm.xlu0 %1524, %v1405
    %v1526 = vpop.permute.xlu0 %1525
    %1527 = vset.pattern.permute.xlu0 0
    %1528 = vperm.xlu0 %1527, %v1407
    %v1529 = vpop.permute.xlu0 %1528
    %1530 = vset.pattern.permute.xlu0 0
    %1531 = vperm.xlu0 %1530, %v1409
    %v1532 = vpop.permute.xlu0 %1531
    %1533 = vset.pattern.permute.xlu0 0
    %1534 = vperm.xlu0 %1533, %v1411
    %v1535 = vpop.permute.xlu0 %1534
    %1536 = vset.pattern.permute.xlu0 0
    %1537 = vperm.xlu0 %1536, %v1413
    %v1538 = vpop.permute.xlu0 %1537
    %1539 = vset.pattern.permute.xlu0 0
    %1540 = vperm.xlu0 %1539, %v1415
    %v1541 = vpop.permute.xlu0 %1540
    %1542 = vset.pattern.permute.xlu0 0
    %1543 = vperm.xlu0 %1542, %v1417
    %v1544 = vpop.permute.xlu0 %1543
    %1545 = vset.pattern.permute.xlu0 0
    %1546 = vperm.xlu0 %1545, %v1419
    %v1547 = vpop.permute.xlu0 %1546
    %v1548 = vlaneseq
    %v1549 = vshrl.u32 %v1548, 7
    %v1550 = vsub.s32 %v1117, %v1549
    %v1551 = vrot.slane %v1454, %v1550
    %v1552 = vlaneseq
    %v1553 = vshrl.u32 %v1552, 7
    %v1554 = vsub.s32 %v1122, %v1553
    %v1555 = vrot.slane %v1457, %v1554
    %v1556 = vsel %vm1127, %v1555, %v1551
    %v1557 = vlaneseq
    %v1558 = vshrl.u32 %v1557, 7
    %v1559 = vsub.s32 %v1129, %v1558
    %v1560 = vrot.slane %v1460, %v1559
    %v1561 = vsel %vm1134, %v1560, %v1556
    %v1562 = vlaneseq
    %v1563 = vshrl.u32 %v1562, 7
    %v1564 = vsub.s32 %v1136, %v1563
    %v1565 = vrot.slane %v1463, %v1564
    %v1566 = vsel %vm1141, %v1565, %v1561
    %v1567 = vlaneseq
    %v1568 = vshrl.u32 %v1567, 7
    %v1569 = vsub.s32 %v1143, %v1568
    %v1570 = vrot.slane %v1466, %v1569
    %v1571 = vsel %vm1148, %v1570, %v1566
    %v1572 = vlaneseq
    %v1573 = vshrl.u32 %v1572, 7
    %v1574 = vsub.s32 %v1150, %v1573
    %v1575 = vrot.slane %v1469, %v1574
    %v1576 = vsel %vm1155, %v1575, %v1571
    %v1577 = vlaneseq
    %v1578 = vshrl.u32 %v1577, 7
    %v1579 = vsub.s32 %v1157, %v1578
    %v1580 = vrot.slane %v1472, %v1579
    %v1581 = vsel %vm1162, %v1580, %v1576
    %v1582 = vlaneseq
    %v1583 = vshrl.u32 %v1582, 7
    %v1584 = vsub.s32 %v1164, %v1583
    %v1585 = vrot.slane %v1475, %v1584
    %v1586 = vsel %vm1169, %v1585, %v1581
    %v1587 = vlaneseq
    %v1588 = vshrl.u32 %v1587, 7
    %v1589 = vsub.s32 %v1171, %v1588
    %v1590 = vrot.slane %v1478, %v1589
    %v1591 = vsel %vm1176, %v1590, %v1586
    %v1592 = vlaneseq
    %v1593 = vshrl.u32 %v1592, 7
    %v1594 = vsub.s32 %v1178, %v1593
    %v1595 = vrot.slane %v1481, %v1594
    %v1596 = vsel %vm1183, %v1595, %v1591
    %v1597 = vlaneseq
    %v1598 = vshrl.u32 %v1597, 7
    %v1599 = vsub.s32 %v1185, %v1598
    %v1600 = vrot.slane %v1484, %v1599
    %v1601 = vsel %vm1190, %v1600, %v1596
    %v1602 = vlaneseq
    %v1603 = vshrl.u32 %v1602, 7
    %v1604 = vsub.s32 %v1192, %v1603
    %v1605 = vrot.slane %v1487, %v1604
    %v1606 = vsel %vm1197, %v1605, %v1601
    %v1607 = vlaneseq
    %v1608 = vshrl.u32 %v1607, 7
    %v1609 = vsub.s32 %v1199, %v1608
    %v1610 = vrot.slane %v1490, %v1609
    %v1611 = vsel %vm1204, %v1610, %v1606
    %v1612 = vlaneseq
    %v1613 = vshrl.u32 %v1612, 7
    %v1614 = vsub.s32 %v1206, %v1613
    %v1615 = vrot.slane %v1493, %v1614
    %v1616 = vsel %vm1211, %v1615, %v1611
    %v1617 = vlaneseq
    %v1618 = vshrl.u32 %v1617, 7
    %v1619 = vsub.s32 %v1213, %v1618
    %v1620 = vrot.slane %v1496, %v1619
    %v1621 = vsel %vm1218, %v1620, %v1616
    %v1622 = vlaneseq
    %v1623 = vshrl.u32 %v1622, 7
    %v1624 = vsub.s32 %v1220, %v1623
    %v1625 = vrot.slane %v1499, %v1624
    %v1626 = vsel %vm1225, %v1625, %v1621
    %v1627 = vlaneseq
    %v1628 = vshrl.u32 %v1627, 7
    %v1629 = vsub.s32 %v1117, %v1628
    %v1630 = vrot.slane %v1502, %v1629
    %v1631 = vlaneseq
    %v1632 = vshrl.u32 %v1631, 7
    %v1633 = vsub.s32 %v1122, %v1632
    %v1634 = vrot.slane %v1505, %v1633
    %v1635 = vsel %vm1127, %v1634, %v1630
    %v1636 = vlaneseq
    %v1637 = vshrl.u32 %v1636, 7
    %v1638 = vsub.s32 %v1129, %v1637
    %v1639 = vrot.slane %v1508, %v1638
    %v1640 = vsel %vm1134, %v1639, %v1635
    %v1641 = vlaneseq
    %v1642 = vshrl.u32 %v1641, 7
    %v1643 = vsub.s32 %v1136, %v1642
    %v1644 = vrot.slane %v1511, %v1643
    %v1645 = vsel %vm1141, %v1644, %v1640
    %v1646 = vlaneseq
    %v1647 = vshrl.u32 %v1646, 7
    %v1648 = vsub.s32 %v1143, %v1647
    %v1649 = vrot.slane %v1514, %v1648
    %v1650 = vsel %vm1148, %v1649, %v1645
    %v1651 = vlaneseq
    %v1652 = vshrl.u32 %v1651, 7
    %v1653 = vsub.s32 %v1150, %v1652
    %v1654 = vrot.slane %v1517, %v1653
    %v1655 = vsel %vm1155, %v1654, %v1650
    %v1656 = vlaneseq
    %v1657 = vshrl.u32 %v1656, 7
    %v1658 = vsub.s32 %v1157, %v1657
    %v1659 = vrot.slane %v1520, %v1658
    %v1660 = vsel %vm1162, %v1659, %v1655
    %v1661 = vlaneseq
    %v1662 = vshrl.u32 %v1661, 7
    %v1663 = vsub.s32 %v1164, %v1662
    %v1664 = vrot.slane %v1523, %v1663
    %v1665 = vsel %vm1169, %v1664, %v1660
    %v1666 = vlaneseq
    %v1667 = vshrl.u32 %v1666, 7
    %v1668 = vsub.s32 %v1171, %v1667
    %v1669 = vrot.slane %v1526, %v1668
    %v1670 = vsel %vm1176, %v1669, %v1665
    %v1671 = vlaneseq
    %v1672 = vshrl.u32 %v1671, 7
    %v1673 = vsub.s32 %v1178, %v1672
    %v1674 = vrot.slane %v1529, %v1673
    %v1675 = vsel %vm1183, %v1674, %v1670
    %v1676 = vlaneseq
    %v1677 = vshrl.u32 %v1676, 7
    %v1678 = vsub.s32 %v1185, %v1677
    %v1679 = vrot.slane %v1532, %v1678
    %v1680 = vsel %vm1190, %v1679, %v1675
    %v1681 = vlaneseq
    %v1682 = vshrl.u32 %v1681, 7
    %v1683 = vsub.s32 %v1192, %v1682
    %v1684 = vrot.slane %v1535, %v1683
    %v1685 = vsel %vm1197, %v1684, %v1680
    %v1686 = vlaneseq
    %v1687 = vshrl.u32 %v1686, 7
    %v1688 = vsub.s32 %v1199, %v1687
    %v1689 = vrot.slane %v1538, %v1688
    %v1690 = vsel %vm1204, %v1689, %v1685
    %v1691 = vlaneseq
    %v1692 = vshrl.u32 %v1691, 7
    %v1693 = vsub.s32 %v1206, %v1692
    %v1694 = vrot.slane %v1541, %v1693
    %v1695 = vsel %vm1211, %v1694, %v1690
    %v1696 = vlaneseq
    %v1697 = vshrl.u32 %v1696, 7
    %v1698 = vsub.s32 %v1213, %v1697
    %v1699 = vrot.slane %v1544, %v1698
    %v1700 = vsel %vm1218, %v1699, %v1695
    %v1701 = vlaneseq
    %v1702 = vshrl.u32 %v1701, 7
    %v1703 = vsub.s32 %v1220, %v1702
    %v1704 = vrot.slane %v1547, %v1703
    %v1705 = vsel %vm1225, %v1704, %v1700
    %v1706 = vsel %vm1306, %v1705, %v1626
    %v1708 = vsel %vm1309, %v1706, 0.0
    %1709 = vadd.xlane.f32.xlu0 %v1708
    %v1710 = vpop.xlane.xlu0 %1709
    %v1711 = vrcp.pop %v1710
    %v1713 = vlaneseq
    %v1714 = vshrl.u32 %v1713, 7
    %v1715 = vsub.s32 0, %v1714
    %v1716 = vrot.slane %v1711, %v1715
    %v1717 = vlaneseq
    %v1718 = vshrl.u32 %v1717, 7
    %v1719 = vsub.s32 1, %v1718
    %v1720 = vrot.slane %v1711, %v1719
    %v1723 = vmul.f32 %v1357, %v1716
    %v1724 = vmul.f32 %v1359, %v1716
    %v1725 = vmul.f32 %v1361, %v1716
    %v1726 = vmul.f32 %v1363, %v1716
    %v1727 = vmul.f32 %v1365, %v1716
    %v1728 = vmul.f32 %v1367, %v1716
    %v1729 = vmul.f32 %v1369, %v1716
    %v1730 = vmul.f32 %v1371, %v1716
    %v1731 = vmul.f32 %v1373, %v1716
    %v1732 = vmul.f32 %v1375, %v1716
    %v1733 = vmul.f32 %v1377, %v1716
    %v1734 = vmul.f32 %v1379, %v1716
    %v1735 = vmul.f32 %v1381, %v1716
    %v1736 = vmul.f32 %v1383, %v1716
    %v1737 = vmul.f32 %v1385, %v1716
    %v1738 = vmul.f32 %v1387, %v1716
    %v1739 = vmul.f32 %v1389, %v1720
    %v1740 = vmul.f32 %v1391, %v1720
    %v1741 = vmul.f32 %v1393, %v1720
    %v1742 = vmul.f32 %v1395, %v1720
    %v1743 = vmul.f32 %v1397, %v1720
    %v1744 = vmul.f32 %v1399, %v1720
    %v1745 = vmul.f32 %v1401, %v1720
    %v1746 = vmul.f32 %v1403, %v1720
    %v1747 = vmul.f32 %v1405, %v1720
    %v1748 = vmul.f32 %v1407, %v1720
    %v1749 = vmul.f32 %v1409, %v1720
    %v1750 = vmul.f32 %v1411, %v1720
    %v1751 = vmul.f32 %v1413, %v1720
    %v1752 = vmul.f32 %v1415, %v1720
    %v1753 = vmul.f32 %v1417, %v1720
    %v1754 = vmul.f32 %v1419, %v1720
    %1787 = vset.pattern.permute.xlu0 0
    %1788 = vperm.xlu0 %1787, %v1723
    %v1789 = vpop.permute.xlu0 %1788
    %1790 = vset.pattern.permute.xlu0 0
    %1791 = vperm.xlu0 %1790, %v1724
    %v1792 = vpop.permute.xlu0 %1791
    %1793 = vset.pattern.permute.xlu0 0
    %1794 = vperm.xlu0 %1793, %v1725
    %v1795 = vpop.permute.xlu0 %1794
    %1796 = vset.pattern.permute.xlu0 0
    %1797 = vperm.xlu0 %1796, %v1726
    %v1798 = vpop.permute.xlu0 %1797
    %1799 = vset.pattern.permute.xlu0 0
    %1800 = vperm.xlu0 %1799, %v1727
    %v1801 = vpop.permute.xlu0 %1800
    %1802 = vset.pattern.permute.xlu0 0
    %1803 = vperm.xlu0 %1802, %v1728
    %v1804 = vpop.permute.xlu0 %1803
    %1805 = vset.pattern.permute.xlu0 0
    %1806 = vperm.xlu0 %1805, %v1729
    %v1807 = vpop.permute.xlu0 %1806
    %1808 = vset.pattern.permute.xlu0 0
    %1809 = vperm.xlu0 %1808, %v1730
    %v1810 = vpop.permute.xlu0 %1809
    %1811 = vset.pattern.permute.xlu0 0
    %1812 = vperm.xlu0 %1811, %v1731
    %v1813 = vpop.permute.xlu0 %1812
    %1814 = vset.pattern.permute.xlu0 0
    %1815 = vperm.xlu0 %1814, %v1732
    %v1816 = vpop.permute.xlu0 %1815
    %1817 = vset.pattern.permute.xlu0 0
    %1818 = vperm.xlu0 %1817, %v1733
    %v1819 = vpop.permute.xlu0 %1818
    %1820 = vset.pattern.permute.xlu0 0
    %1821 = vperm.xlu0 %1820, %v1734
    %v1822 = vpop.permute.xlu0 %1821
    %1823 = vset.pattern.permute.xlu0 0
    %1824 = vperm.xlu0 %1823, %v1735
    %v1825 = vpop.permute.xlu0 %1824
    %1826 = vset.pattern.permute.xlu0 0
    %1827 = vperm.xlu0 %1826, %v1736
    %v1828 = vpop.permute.xlu0 %1827
    %1829 = vset.pattern.permute.xlu0 0
    %1830 = vperm.xlu0 %1829, %v1737
    %v1831 = vpop.permute.xlu0 %1830
    %1832 = vset.pattern.permute.xlu0 0
    %1833 = vperm.xlu0 %1832, %v1738
    %v1834 = vpop.permute.xlu0 %1833
    %1835 = vset.pattern.permute.xlu0 0
    %1836 = vperm.xlu0 %1835, %v1739
    %v1837 = vpop.permute.xlu0 %1836
    %1838 = vset.pattern.permute.xlu0 0
    %1839 = vperm.xlu0 %1838, %v1740
    %v1840 = vpop.permute.xlu0 %1839
    %1841 = vset.pattern.permute.xlu0 0
    %1842 = vperm.xlu0 %1841, %v1741
    %v1843 = vpop.permute.xlu0 %1842
    %1844 = vset.pattern.permute.xlu0 0
    %1845 = vperm.xlu0 %1844, %v1742
    %v1846 = vpop.permute.xlu0 %1845
    %1847 = vset.pattern.permute.xlu0 0
    %1848 = vperm.xlu0 %1847, %v1743
    %v1849 = vpop.permute.xlu0 %1848
    %1850 = vset.pattern.permute.xlu0 0
    %1851 = vperm.xlu0 %1850, %v1744
    %v1852 = vpop.permute.xlu0 %1851
    %1853 = vset.pattern.permute.xlu0 0
    %1854 = vperm.xlu0 %1853, %v1745
    %v1855 = vpop.permute.xlu0 %1854
    %1856 = vset.pattern.permute.xlu0 0
    %1857 = vperm.xlu0 %1856, %v1746
    %v1858 = vpop.permute.xlu0 %1857
    %1859 = vset.pattern.permute.xlu0 0
    %1860 = vperm.xlu0 %1859, %v1747
    %v1861 = vpop.permute.xlu0 %1860
    %1862 = vset.pattern.permute.xlu0 0
    %1863 = vperm.xlu0 %1862, %v1748
    %v1864 = vpop.permute.xlu0 %1863
    %1865 = vset.pattern.permute.xlu0 0
    %1866 = vperm.xlu0 %1865, %v1749
    %v1867 = vpop.permute.xlu0 %1866
    %1868 = vset.pattern.permute.xlu0 0
    %1869 = vperm.xlu0 %1868, %v1750
    %v1870 = vpop.permute.xlu0 %1869
    %1871 = vset.pattern.permute.xlu0 0
    %1872 = vperm.xlu0 %1871, %v1751
    %v1873 = vpop.permute.xlu0 %1872
    %1874 = vset.pattern.permute.xlu0 0
    %1875 = vperm.xlu0 %1874, %v1752
    %v1876 = vpop.permute.xlu0 %1875
    %1877 = vset.pattern.permute.xlu0 0
    %1878 = vperm.xlu0 %1877, %v1753
    %v1879 = vpop.permute.xlu0 %1878
    %1880 = vset.pattern.permute.xlu0 0
    %1881 = vperm.xlu0 %1880, %v1754
    %v1882 = vpop.permute.xlu0 %1881
    %v1883 = vlaneseq
    %v1884 = vshrl.u32 %v1883, 7
    %v1885 = vsub.s32 %v1117, %v1884
    %v1886 = vrot.slane %v1789, %v1885
    %v1887 = vlaneseq
    %v1888 = vshrl.u32 %v1887, 7
    %v1889 = vsub.s32 %v1122, %v1888
    %v1890 = vrot.slane %v1792, %v1889
    %v1891 = vsel %vm1127, %v1890, %v1886
    %v1892 = vlaneseq
    %v1893 = vshrl.u32 %v1892, 7
    %v1894 = vsub.s32 %v1129, %v1893
    %v1895 = vrot.slane %v1795, %v1894
    %v1896 = vsel %vm1134, %v1895, %v1891
    %v1897 = vlaneseq
    %v1898 = vshrl.u32 %v1897, 7
    %v1899 = vsub.s32 %v1136, %v1898
    %v1900 = vrot.slane %v1798, %v1899
    %v1901 = vsel %vm1141, %v1900, %v1896
    %v1902 = vlaneseq
    %v1903 = vshrl.u32 %v1902, 7
    %v1904 = vsub.s32 %v1143, %v1903
    %v1905 = vrot.slane %v1801, %v1904
    %v1906 = vsel %vm1148, %v1905, %v1901
    %v1907 = vlaneseq
    %v1908 = vshrl.u32 %v1907, 7
    %v1909 = vsub.s32 %v1150, %v1908
    %v1910 = vrot.slane %v1804, %v1909
    %v1911 = vsel %vm1155, %v1910, %v1906
    %v1912 = vlaneseq
    %v1913 = vshrl.u32 %v1912, 7
    %v1914 = vsub.s32 %v1157, %v1913
    %v1915 = vrot.slane %v1807, %v1914
    %v1916 = vsel %vm1162, %v1915, %v1911
    %v1917 = vlaneseq
    %v1918 = vshrl.u32 %v1917, 7
    %v1919 = vsub.s32 %v1164, %v1918
    %v1920 = vrot.slane %v1810, %v1919
    %v1921 = vsel %vm1169, %v1920, %v1916
    %v1922 = vlaneseq
    %v1923 = vshrl.u32 %v1922, 7
    %v1924 = vsub.s32 %v1171, %v1923
    %v1925 = vrot.slane %v1813, %v1924
    %v1926 = vsel %vm1176, %v1925, %v1921
    %v1927 = vlaneseq
    %v1928 = vshrl.u32 %v1927, 7
    %v1929 = vsub.s32 %v1178, %v1928
    %v1930 = vrot.slane %v1816, %v1929
    %v1931 = vsel %vm1183, %v1930, %v1926
    %v1932 = vlaneseq
    %v1933 = vshrl.u32 %v1932, 7
    %v1934 = vsub.s32 %v1185, %v1933
    %v1935 = vrot.slane %v1819, %v1934
    %v1936 = vsel %vm1190, %v1935, %v1931
    %v1937 = vlaneseq
    %v1938 = vshrl.u32 %v1937, 7
    %v1939 = vsub.s32 %v1192, %v1938
    %v1940 = vrot.slane %v1822, %v1939
    %v1941 = vsel %vm1197, %v1940, %v1936
    %v1942 = vlaneseq
    %v1943 = vshrl.u32 %v1942, 7
    %v1944 = vsub.s32 %v1199, %v1943
    %v1945 = vrot.slane %v1825, %v1944
    %v1946 = vsel %vm1204, %v1945, %v1941
    %v1947 = vlaneseq
    %v1948 = vshrl.u32 %v1947, 7
    %v1949 = vsub.s32 %v1206, %v1948
    %v1950 = vrot.slane %v1828, %v1949
    %v1951 = vsel %vm1211, %v1950, %v1946
    %v1952 = vlaneseq
    %v1953 = vshrl.u32 %v1952, 7
    %v1954 = vsub.s32 %v1213, %v1953
    %v1955 = vrot.slane %v1831, %v1954
    %v1956 = vsel %vm1218, %v1955, %v1951
    %v1957 = vlaneseq
    %v1958 = vshrl.u32 %v1957, 7
    %v1959 = vsub.s32 %v1220, %v1958
    %v1960 = vrot.slane %v1834, %v1959
    %v1961 = vsel %vm1225, %v1960, %v1956
    %v1962 = vlaneseq
    %v1963 = vshrl.u32 %v1962, 7
    %v1964 = vsub.s32 %v1117, %v1963
    %v1965 = vrot.slane %v1837, %v1964
    %v1966 = vlaneseq
    %v1967 = vshrl.u32 %v1966, 7
    %v1968 = vsub.s32 %v1122, %v1967
    %v1969 = vrot.slane %v1840, %v1968
    %v1970 = vsel %vm1127, %v1969, %v1965
    %v1971 = vlaneseq
    %v1972 = vshrl.u32 %v1971, 7
    %v1973 = vsub.s32 %v1129, %v1972
    %v1974 = vrot.slane %v1843, %v1973
    %v1975 = vsel %vm1134, %v1974, %v1970
    %v1976 = vlaneseq
    %v1977 = vshrl.u32 %v1976, 7
    %v1978 = vsub.s32 %v1136, %v1977
    %v1979 = vrot.slane %v1846, %v1978
    %v1980 = vsel %vm1141, %v1979, %v1975
    %v1981 = vlaneseq
    %v1982 = vshrl.u32 %v1981, 7
    %v1983 = vsub.s32 %v1143, %v1982
    %v1984 = vrot.slane %v1849, %v1983
    %v1985 = vsel %vm1148, %v1984, %v1980
    %v1986 = vlaneseq
    %v1987 = vshrl.u32 %v1986, 7
    %v1988 = vsub.s32 %v1150, %v1987
    %v1989 = vrot.slane %v1852, %v1988
    %v1990 = vsel %vm1155, %v1989, %v1985
    %v1991 = vlaneseq
    %v1992 = vshrl.u32 %v1991, 7
    %v1993 = vsub.s32 %v1157, %v1992
    %v1994 = vrot.slane %v1855, %v1993
    %v1995 = vsel %vm1162, %v1994, %v1990
    %v1996 = vlaneseq
    %v1997 = vshrl.u32 %v1996, 7
    %v1998 = vsub.s32 %v1164, %v1997
    %v1999 = vrot.slane %v1858, %v1998
    %v2000 = vsel %vm1169, %v1999, %v1995
    %v2001 = vlaneseq
    %v2002 = vshrl.u32 %v2001, 7
    %v2003 = vsub.s32 %v1171, %v2002
    %v2004 = vrot.slane %v1861, %v2003
    %v2005 = vsel %vm1176, %v2004, %v2000
    %v2006 = vlaneseq
    %v2007 = vshrl.u32 %v2006, 7
    %v2008 = vsub.s32 %v1178, %v2007
    %v2009 = vrot.slane %v1864, %v2008
    %v2010 = vsel %vm1183, %v2009, %v2005
    %v2011 = vlaneseq
    %v2012 = vshrl.u32 %v2011, 7
    %v2013 = vsub.s32 %v1185, %v2012
    %v2014 = vrot.slane %v1867, %v2013
    %v2015 = vsel %vm1190, %v2014, %v2010
    %v2016 = vlaneseq
    %v2017 = vshrl.u32 %v2016, 7
    %v2018 = vsub.s32 %v1192, %v2017
    %v2019 = vrot.slane %v1870, %v2018
    %v2020 = vsel %vm1197, %v2019, %v2015
    %v2021 = vlaneseq
    %v2022 = vshrl.u32 %v2021, 7
    %v2023 = vsub.s32 %v1199, %v2022
    %v2024 = vrot.slane %v1873, %v2023
    %v2025 = vsel %vm1204, %v2024, %v2020
    %v2026 = vlaneseq
    %v2027 = vshrl.u32 %v2026, 7
    %v2028 = vsub.s32 %v1206, %v2027
    %v2029 = vrot.slane %v1876, %v2028
    %v2030 = vsel %vm1211, %v2029, %v2025
    %v2031 = vlaneseq
    %v2032 = vshrl.u32 %v2031, 7
    %v2033 = vsub.s32 %v1213, %v2032
    %v2034 = vrot.slane %v1879, %v2033
    %v2035 = vsel %vm1218, %v2034, %v2030
    %v2036 = vlaneseq
    %v2037 = vshrl.u32 %v2036, 7
    %v2038 = vsub.s32 %v1220, %v2037
    %v2039 = vrot.slane %v1882, %v2038
    %v2040 = vsel %vm1225, %v2039, %v2035
    %v2041 = vsel %vm1306, %v2040, %v1961
    %2043 = vst [vmem:[#allocation16] sm:$0x3] %v2041
    %v2044 = vpack.c.bf16 %v1724, %v1723
    %v2045 = vpack.c.bf16 %v1726, %v1725
    %v2046 = vpack.c.bf16 %v1728, %v1727
    %v2047 = vpack.c.bf16 %v1730, %v1729
    %v2048 = vpack.c.bf16 %v1732, %v1731
    %v2049 = vpack.c.bf16 %v1734, %v1733
    %v2050 = vpack.c.bf16 %v1736, %v1735
    %v2051 = vpack.c.bf16 %v1738, %v1737
    %v2052 = vpack.c.bf16 %v1740, %v1739
    %v2053 = vpack.c.bf16 %v1742, %v1741
    %v2054 = vpack.c.bf16 %v1744, %v1743
    %v2055 = vpack.c.bf16 %v1746, %v1745
    %v2056 = vpack.c.bf16 %v1748, %v1747
    %v2057 = vpack.c.bf16 %v1750, %v1749
    %v2058 = vpack.c.bf16 %v1752, %v1751
    %v2059 = vpack.c.bf16 %v1754, %v1753
    %v2060 = vld [vmem:[#allocation11] sm:$0xf]
    %v2061 = vld [vmem:[#allocation11 + $0x4] sm:$0xf]
    %v2062 = vld [vmem:[#allocation11 + $0x8] sm:$0xf]
    %v2063 = vld [vmem:[#allocation11 + $0xc] sm:$0xf]
    %v2064 = vld [vmem:[#allocation11 + $0x10] sm:$0xf]
    %v2065 = vld [vmem:[#allocation11 + $0x14] sm:$0xf]
    %v2066 = vld [vmem:[#allocation11 + $0x18] sm:$0xf]
    %v2067 = vld [vmem:[#allocation11 + $0x1c] sm:$0xf]
    %v2068 = vld [vmem:[#allocation11 + $0x20] sm:$0xf]
    %v2069 = vld [vmem:[#allocation11 + $0x24] sm:$0xf]
    %v2070 = vld [vmem:[#allocation11 + $0x28] sm:$0xf]
    %v2071 = vld [vmem:[#allocation11 + $0x2c] sm:$0xf]
    %v2072 = vld [vmem:[#allocation11 + $0x30] sm:$0xf]
    %v2073 = vld [vmem:[#allocation11 + $0x34] sm:$0xf]
    %v2074 = vld [vmem:[#allocation11 + $0x38] sm:$0xf]
    %v2075 = vld [vmem:[#allocation11 + $0x3c] sm:$0xf]
    %v2076 = vld [vmem:[#allocation11 + $0x40] sm:$0xf]
    %v2077 = vld [vmem:[#allocation11 + $0x44] sm:$0xf]
    %v2078 = vld [vmem:[#allocation11 + $0x48] sm:$0xf]
    %v2079 = vld [vmem:[#allocation11 + $0x4c] sm:$0xf]
    %v2080 = vld [vmem:[#allocation11 + $0x50] sm:$0xf]
    %v2081 = vld [vmem:[#allocation11 + $0x54] sm:$0xf]
    %v2082 = vld [vmem:[#allocation11 + $0x58] sm:$0xf]
    %v2083 = vld [vmem:[#allocation11 + $0x5c] sm:$0xf]
    %v2084 = vld [vmem:[#allocation11 + $0x60] sm:$0xf]
    %v2085 = vld [vmem:[#allocation11 + $0x64] sm:$0xf]
    %v2086 = vld [vmem:[#allocation11 + $0x68] sm:$0xf]
    %v2087 = vld [vmem:[#allocation11 + $0x6c] sm:$0xf]
    %v2088 = vld [vmem:[#allocation11 + $0x70] sm:$0xf]
    %v2089 = vld [vmem:[#allocation11 + $0x74] sm:$0xf]
    %v2090 = vld [vmem:[#allocation11 + $0x78] sm:$0xf]
    %v2091 = vld [vmem:[#allocation11 + $0x7c] sm:$0xf]
    %2093 = vset.pattern.permute.xlu0 0
    %2094 = vperm.xlu0 %2093, %v2044
    %v2095 = vpop.permute.xlu0 %2094
    %2098 = vset.pattern.permute.xlu0 0
    %2099 = vperm.xlu0 %2098, %v2045
    %v2100 = vpop.permute.xlu0 %2099
    %2103 = vset.pattern.permute.xlu0 0
    %2104 = vperm.xlu0 %2103, %v2046
    %v2105 = vpop.permute.xlu0 %2104
    %2108 = vset.pattern.permute.xlu0 0
    %2109 = vperm.xlu0 %2108, %v2047
    %v2110 = vpop.permute.xlu0 %2109
    %2113 = vset.pattern.permute.xlu0 0
    %2114 = vperm.xlu0 %2113, %v2048
    %v2115 = vpop.permute.xlu0 %2114
    %2118 = vset.pattern.permute.xlu0 0
    %2119 = vperm.xlu0 %2118, %v2049
    %v2120 = vpop.permute.xlu0 %2119
    %2123 = vset.pattern.permute.xlu0 0
    %2124 = vperm.xlu0 %2123, %v2050
    %v2125 = vpop.permute.xlu0 %2124
    %2128 = vset.pattern.permute.xlu0 0
    %2129 = vperm.xlu0 %2128, %v2051
    %v2130 = vpop.permute.xlu0 %2129
    %2133 = vset.pattern.permute.xlu0 0
    %2134 = vperm.xlu0 %2133, %v2052
    %v2135 = vpop.permute.xlu0 %2134
    %2138 = vset.pattern.permute.xlu0 0
    %2139 = vperm.xlu0 %2138, %v2053
    %v2140 = vpop.permute.xlu0 %2139
    %2143 = vset.pattern.permute.xlu0 0
    %2144 = vperm.xlu0 %2143, %v2054
    %v2145 = vpop.permute.xlu0 %2144
    %2148 = vset.pattern.permute.xlu0 0
    %2149 = vperm.xlu0 %2148, %v2055
    %v2150 = vpop.permute.xlu0 %2149
    %2153 = vset.pattern.permute.xlu0 0
    %2154 = vperm.xlu0 %2153, %v2056
    %v2155 = vpop.permute.xlu0 %2154
    %2158 = vset.pattern.permute.xlu0 0
    %2159 = vperm.xlu0 %2158, %v2057
    %v2160 = vpop.permute.xlu0 %2159
    %2163 = vset.pattern.permute.xlu0 0
    %2164 = vperm.xlu0 %2163, %v2058
    %v2165 = vpop.permute.xlu0 %2164
    %2168 = vset.pattern.permute.xlu0 0
    %2169 = vperm.xlu0 %2168, %v2059
    %v2170 = vpop.permute.xlu0 %2169
    %v2204 = vunpack.c.l.b16 %v2060
    %v2205 = vunpack.c.l.b16 %v2061
    %v2206 = vunpack.c.l.b16 %v2062
    %v2207 = vunpack.c.l.b16 %v2063
    %v2208 = vunpack.c.l.b16 %v2064
    %v2209 = vunpack.c.l.b16 %v2065
    %v2210 = vunpack.c.l.b16 %v2066
    %v2211 = vunpack.c.l.b16 %v2067
    %v2212 = vunpack.c.l.b16 %v2068
    %v2213 = vunpack.c.l.b16 %v2069
    %v2214 = vunpack.c.l.b16 %v2070
    %v2215 = vunpack.c.l.b16 %v2071
    %v2216 = vunpack.c.l.b16 %v2072
    %v2217 = vunpack.c.l.b16 %v2073
    %v2218 = vunpack.c.l.b16 %v2074
    %v2219 = vunpack.c.l.b16 %v2075
    %v2220 = vunpack.c.l.b16 %v2076
    %v2221 = vunpack.c.l.b16 %v2077
    %v2222 = vunpack.c.l.b16 %v2078
    %v2223 = vunpack.c.l.b16 %v2079
    %v2224 = vunpack.c.l.b16 %v2080
    %v2225 = vunpack.c.l.b16 %v2081
    %v2226 = vunpack.c.l.b16 %v2082
    %v2227 = vunpack.c.l.b16 %v2083
    %v2228 = vunpack.c.l.b16 %v2084
    %v2229 = vunpack.c.l.b16 %v2085
    %v2230 = vunpack.c.l.b16 %v2086
    %v2231 = vunpack.c.l.b16 %v2087
    %v2232 = vunpack.c.l.b16 %v2088
    %v2233 = vunpack.c.l.b16 %v2089
    %v2234 = vunpack.c.l.b16 %v2090
    %v2235 = vunpack.c.l.b16 %v2091
    %v2236 = vpack.c.b16 %v2205, %v2204
    %v2237 = vpack.c.b16 %v2207, %v2206
    %v2238 = vpack.c.b16 %v2209, %v2208
    %v2239 = vpack.c.b16 %v2211, %v2210
    %v2240 = vpack.c.b16 %v2213, %v2212
    %v2241 = vpack.c.b16 %v2215, %v2214
    %v2242 = vpack.c.b16 %v2217, %v2216
    %v2243 = vpack.c.b16 %v2219, %v2218
    %v2244 = vpack.c.b16 %v2221, %v2220
    %v2245 = vpack.c.b16 %v2223, %v2222
    %v2246 = vpack.c.b16 %v2225, %v2224
    %v2247 = vpack.c.b16 %v2227, %v2226
    %v2248 = vpack.c.b16 %v2229, %v2228
    %v2249 = vpack.c.b16 %v2231, %v2230
    %v2250 = vpack.c.b16 %v2233, %v2232
    %v2251 = vpack.c.b16 %v2235, %v2234
    %v2268 = vmul.bf16 %v2095, %v2236
    %v2269 = vmul.bf16 %v2100, %v2237
    %v2270 = vmul.bf16 %v2105, %v2238
    %v2271 = vmul.bf16 %v2110, %v2239
    %v2272 = vmul.bf16 %v2115, %v2240
    %v2273 = vmul.bf16 %v2120, %v2241
    %v2274 = vmul.bf16 %v2125, %v2242
    %v2275 = vmul.bf16 %v2130, %v2243
    %v2276 = vmul.bf16 %v2135, %v2244
    %v2277 = vmul.bf16 %v2140, %v2245
    %v2278 = vmul.bf16 %v2145, %v2246
    %v2279 = vmul.bf16 %v2150, %v2247
    %v2280 = vmul.bf16 %v2155, %v2248
    %v2281 = vmul.bf16 %v2160, %v2249
    %v2282 = vmul.bf16 %v2165, %v2250
    %v2283 = vmul.bf16 %v2170, %v2251
    %v2284 = vunpack.c.l.bf16 %v2268
    %v2285 = vunpack.c.h.bf16 %v2268
    %v2286 = vunpack.c.l.bf16 %v2269
    %v2287 = vunpack.c.h.bf16 %v2269
    %v2288 = vunpack.c.l.bf16 %v2270
    %v2289 = vunpack.c.h.bf16 %v2270
    %v2290 = vunpack.c.l.bf16 %v2271
    %v2291 = vunpack.c.h.bf16 %v2271
    %v2292 = vunpack.c.l.bf16 %v2272
    %v2293 = vunpack.c.h.bf16 %v2272
    %v2294 = vunpack.c.l.bf16 %v2273
    %v2295 = vunpack.c.h.bf16 %v2273
    %v2296 = vunpack.c.l.bf16 %v2274
    %v2297 = vunpack.c.h.bf16 %v2274
    %v2298 = vunpack.c.l.bf16 %v2275
    %v2299 = vunpack.c.h.bf16 %v2275
    %v2300 = vunpack.c.l.bf16 %v2276
    %v2301 = vunpack.c.h.bf16 %v2276
    %v2302 = vunpack.c.l.bf16 %v2277
    %v2303 = vunpack.c.h.bf16 %v2277
    %v2304 = vunpack.c.l.bf16 %v2278
    %v2305 = vunpack.c.h.bf16 %v2278
    %v2306 = vunpack.c.l.bf16 %v2279
    %v2307 = vunpack.c.h.bf16 %v2279
    %v2308 = vunpack.c.l.bf16 %v2280
    %v2309 = vunpack.c.h.bf16 %v2280
    %v2310 = vunpack.c.l.bf16 %v2281
    %v2311 = vunpack.c.h.bf16 %v2281
    %v2312 = vunpack.c.l.bf16 %v2282
    %v2313 = vunpack.c.h.bf16 %v2282
    %v2314 = vunpack.c.l.bf16 %v2283
    %v2315 = vunpack.c.h.bf16 %v2283
    %vm2316 = vcmask 261120
    %v2317 = vsel %vm2316, %v2284, 0.0
    %v2318 = vsel %vm2316, %v2285, 0.0
    %v2319 = vadd.f32 %v2317, %v2318
    %v2320 = vsel %vm2316, %v2286, 0.0
    %v2321 = vadd.f32 %v2319, %v2320
    %v2322 = vsel %vm2316, %v2287, 0.0
    %v2323 = vadd.f32 %v2321, %v2322
    %v2324 = vsel %vm2316, %v2288, 0.0
    %v2325 = vadd.f32 %v2323, %v2324
    %v2326 = vsel %vm2316, %v2289, 0.0
    %v2327 = vadd.f32 %v2325, %v2326
    %v2328 = vsel %vm2316, %v2290, 0.0
    %v2329 = vadd.f32 %v2327, %v2328
    %v2330 = vsel %vm2316, %v2291, 0.0
    %v2331 = vadd.f32 %v2329, %v2330
    %v2332 = vsel %vm2316, %v2292, 0.0
    %v2333 = vadd.f32 %v2331, %v2332
    %v2334 = vsel %vm2316, %v2293, 0.0
    %v2335 = vadd.f32 %v2333, %v2334
    %v2336 = vsel %vm2316, %v2294, 0.0
    %v2337 = vadd.f32 %v2335, %v2336
    %v2338 = vsel %vm2316, %v2295, 0.0
    %v2339 = vadd.f32 %v2337, %v2338
    %v2340 = vsel %vm2316, %v2296, 0.0
    %v2341 = vadd.f32 %v2339, %v2340
    %v2342 = vsel %vm2316, %v2297, 0.0
    %v2343 = vadd.f32 %v2341, %v2342
    %v2344 = vsel %vm2316, %v2298, 0.0
    %v2345 = vadd.f32 %v2343, %v2344
    %v2346 = vsel %vm2316, %v2299, 0.0
    %v2347 = vadd.f32 %v2345, %v2346
    %v2348 = vrot.slane %v2347, 4
    %v2349 = vadd.f32 %v2347, %v2348
    %v2350 = vrot.slane %v2349, 2
    %v2351 = vadd.f32 %v2349, %v2350
    %v2352 = vrot.slane %v2351, 1
    %v2353 = vadd.f32 %v2351, %v2352
    %v2354 = vsel %vm2316, %v2300, 0.0
    %v2355 = vsel %vm2316, %v2301, 0.0
    %v2356 = vadd.f32 %v2354, %v2355
    %v2357 = vsel %vm2316, %v2302, 0.0
    %v2358 = vadd.f32 %v2356, %v2357
    %v2359 = vsel %vm2316, %v2303, 0.0
    %v2360 = vadd.f32 %v2358, %v2359
    %v2361 = vsel %vm2316, %v2304, 0.0
    %v2362 = vadd.f32 %v2360, %v2361
    %v2363 = vsel %vm2316, %v2305, 0.0
    %v2364 = vadd.f32 %v2362, %v2363
    %v2365 = vsel %vm2316, %v2306, 0.0
    %v2366 = vadd.f32 %v2364, %v2365
    %v2367 = vsel %vm2316, %v2307, 0.0
    %v2368 = vadd.f32 %v2366, %v2367
    %v2369 = vsel %vm2316, %v2308, 0.0
    %v2370 = vadd.f32 %v2368, %v2369
    %v2371 = vsel %vm2316, %v2309, 0.0
    %v2372 = vadd.f32 %v2370, %v2371
    %v2373 = vsel %vm2316, %v2310, 0.0
    %v2374 = vadd.f32 %v2372, %v2373
    %v2375 = vsel %vm2316, %v2311, 0.0
    %v2376 = vadd.f32 %v2374, %v2375
    %v2377 = vsel %vm2316, %v2312, 0.0
    %v2378 = vadd.f32 %v2376, %v2377
    %v2379 = vsel %vm2316, %v2313, 0.0
    %v2380 = vadd.f32 %v2378, %v2379
    %v2381 = vsel %vm2316, %v2314, 0.0
    %v2382 = vadd.f32 %v2380, %v2381
    %v2383 = vsel %vm2316, %v2315, 0.0
    %v2384 = vadd.f32 %v2382, %v2383
    %v2385 = vrot.slane %v2384, 4
    %v2386 = vadd.f32 %v2384, %v2385
    %v2387 = vrot.slane %v2386, 2
    %v2388 = vadd.f32 %v2386, %v2387
    %v2389 = vrot.slane %v2388, 1
    %v2390 = vadd.f32 %v2388, %v2389
    %v2393 = vsel %vm1306, %v2390, %v2353
    %vm2395 = vcmask 254976
    %2396 = vst.msk [vmem:[#allocation15] sm:$0x3] %vm2395, %v2393
    // Predicated region
    $region62: #{tpu_custom_call.1} parent=1 // pred_check
      _
    $region63: #{tpu_custom_call.1} parent=1 // pred_check_branch
      %2398 = sbr.rel (0) target = $region65
    $region64: #{tpu_custom_call.1} parent=1 // pred_region
      %s2400 = ssub.s32 32, 32
      %2401 = vsyncadd [#allocation5], %s2400
      %s2403 = sshll.u32 [#allocation15], 4
      %s2404 = int_to_ptr.vmem [resolvable:$true] %s2403
      %2406 = dma.vmem_to_hbm [thread:$0]  %s2404, 32, %s8, [#allocation5]
    $region65: #{tpu_custom_call.1} parent=1 // pred_fallthru
      _
    // Predicated region
    $region66: #{tpu_custom_call.1} parent=1 // pred_check
      _
    $region67: #{tpu_custom_call.1} parent=1 // pred_check_branch
      %2408 = sbr.rel (0) target = $region69
    $region68: #{tpu_custom_call.1} parent=1 // pred_region
      %s2410 = ssub.s32 32, 32
      %2411 = vsyncadd [#allocation17], %s2410
      %s2413 = sshll.u32 [#allocation16], 4
      %s2414 = int_to_ptr.vmem [resolvable:$true] %s2413
      %2416 = dma.vmem_to_hbm [thread:$0]  %s2414, 32, %s9, [#allocation17]
    $region69: #{tpu_custom_call.1} parent=1 // pred_fallthru
      _
    // Predicated region
    $region70: #{tpu_custom_call.1} parent=1 // pred_check
      _
    $region71: #{tpu_custom_call.1} parent=1 // pred_check_branch
      %2418 = sbr.rel (0) target = $region73
    $region72: #{tpu_custom_call.1} parent=1 // pred_region
      %2419 = dma.done [#allocation5], 32
    $region73: #{tpu_custom_call.1} parent=1 // pred_fallthru
      _
    // Predicated region
    $region74: #{tpu_custom_call.1} parent=1 // pred_check
      _
    $region75: #{tpu_custom_call.1} parent=1 // pred_check_branch
      %2421 = sbr.rel (0) target = $region77
    $region76: #{tpu_custom_call.1} parent=1 // pred_region
      %2422 = dma.done [#allocation17], 32
    $region77: #{tpu_custom_call.1} parent=1 // pred_fallthru
      _
    %2423 = vsyncpa [#allocation4], 1
    %2424 = vsyncpa [#allocation7], 1
    %2425 = vsyncpa [#allocation10], 1
    %2426 = vsyncpa [#allocation13], 1
    %2427 = vsyncpa [#allocation5], 1
    %2428 = vsyncpa [#allocation17], 1

</llo_original>
